<compile_context>
chip_gen: v7x
topology: tpu7x:2x2x1
jax: 0.10.0
libtpu: 0.0.40
codegen_flags: <defaults>
</compile_context>

<pallas_src>
import jax
import jax.numpy as jnp
import numpy as np
from jax import lax
from jax.experimental import pallas as pl
from jax.experimental.pallas import tpu as pltpu

H_LSTM = 64  # LSTM hidden size (fixed by the module)


def lstm_model_kernel(x_text_ref, feat_ref,
                      w1_ref, w2_ref, wf_ref,
                      wih_ref, whh_ref, wo_ref,
                      bias_ref,
                      out_ref,
                      xproj_ref):
    f32 = jnp.float32
    bf16 = jnp.bfloat16
    H = H_LSTM

    feats = feat_ref[...]                                   # (T, B, F) f32, time-major
    T, B, F = feats.shape

    # ---- unpack the packed bias slab (all field starts are 128-lane aligned) -----------
    b1 = bias_ref[:, 0:128]                                  # text_fc1 bias
    b2 = bias_ref[:, 128:192]                                # text_fc2 bias
    bfe = bias_ref[:, 256:288]                               # features_fc bias
    bg = bias_ref[:, 384:640]                                # fused LSTM bias (g cols *2)
    bo = bias_ref[:, 640:641]                                # fc_out bias

    # ---- hoisted LSTM input projection: ONE well-shaped matmul off the critical path ----
    # (T,B,F) -> (T*B,F) collapse is layout-preserving because B == 8 (one f32 sublane tile).
    feats2d = feats.reshape(T * B, F)
    xproj_ref[...] = (jnp.dot(feats2d.astype(bf16), wih_ref[...],
                              preferred_element_type=f32)
                      + bg).reshape(T, B, 4 * H)             # (T, B, 4H) f32, to scratch

    # ---- text branch: relu(fc1) -> relu(fc2) (independent of the recurrence) -----------
    x = x_text_ref[...].astype(bf16)                         # (B, D_text)
    h1 = jnp.maximum(
        jnp.dot(x, w1_ref[...], preferred_element_type=f32) + b1, 0.0)                 # (B,128)
    h2 = jnp.maximum(
        jnp.dot(h1.astype(bf16), w2_ref[...], preferred_element_type=f32) + b2, 0.0)   # (B,64)

    # ---- feature branch: relu(features_fc) on last timestep ----------------------------
    f_last = feats[T - 1].astype(bf16)                       # (B, F)
    f_out = jnp.maximum(
        jnp.dot(f_last, wf_ref[...], preferred_element_type=f32) + bfe, 0.0)           # (B,32)

    # ---- single-layer LSTM recurrence (gate order i,f,g,o like PyTorch) ----------------
    whh = whh_ref[...]                                       # (H, 4H) bf16, g cols *2, hoisted

    def step(t, carry):
        h, c = carry                                         # (B, H) f32 each
        gates = xproj_ref[t] + jnp.dot(h.astype(bf16), whh,
                                       preferred_element_type=f32)      # (B, 4H) f32
        # One full-width sigmoid EUP push; g columns were pre-scaled by 2 host-side,
        # so tanh(g) = 2*sigmoid(2g) - 1 is a cheap VPU fma on the g slice.
        s = jax.nn.sigmoid(gates)                            # sig(i)|sig(f)|sig(2g)|sig(o)
        i_g = s[:, 0:H]
        f_g = s[:, H:2 * H]
        g_g = 2.0 * s[:, 2 * H:3 * H] - 1.0                  # == tanh(g)
        o_g = s[:, 3 * H:4 * H]
        c_new = f_g * c + i_g * g_g
        h_new = o_g * jnp.tanh(c_new)
        return (h_new, c_new)

    h0 = jnp.zeros((B, H), f32)
    c0 = jnp.zeros((B, H), f32)
    # T is static; fully unroll so the LLO scheduler sees across steps.
    h_last, _ = lax.fori_loop(0, T, step, (h0, c0), unroll=True)        # lstm_out[:, -1, :]

    # ---- output head: no concatenate — single (160,1) weight sliced in-kernel ----------
    wo = wo_ref[...]                                         # (160, 1) bf16
    logits = (jnp.dot(h2.astype(bf16), wo[0:64, :], preferred_element_type=f32)
              + jnp.dot(h_last.astype(bf16), wo[64:128, :], preferred_element_type=f32)
              + jnp.dot(f_out.astype(bf16), wo[128:160, :], preferred_element_type=f32)
              + bo)                                          # (B, 1)
    # TODO(synk): (B,1) store is a masked vst; emit a lane-padded output if this
    # becomes a hot serving kernel.
    out_ref[...] = jax.nn.sigmoid(logits)


def prepare_params(p):
    """One-time host-side prep: bf16 matmul operands, fused+g-prescaled LSTM bias,
    single packed 128-lane-aligned bias slab."""
    bf16 = jnp.bfloat16
    f32 = jnp.float32
    H = H_LSTM

    # Pre-scale g-gate columns by 2 (exact: power-of-two scale) for the
    # tanh(x) = 2*sigmoid(2x) - 1 trick inside the kernel.
    gscale = jnp.concatenate([jnp.ones((1, 2 * H), f32),
                              jnp.full((1, H), 2.0, f32),
                              jnp.ones((1, H), f32)], axis=1)            # (1, 4H)
    wih = (p["wih"] * gscale).astype(bf16)
    whh = (p["whh"] * gscale).astype(bf16)
    b_gates = (p["bih"] + p["bhh"]) * gscale                             # (1, 4H) f32

    # Packed bias slab: fields start on 128-lane boundaries.
    bias = jnp.zeros((1, 768), f32)
    bias = bias.at[:, 0:128].set(p["b1"])
    bias = bias.at[:, 128:192].set(p["b2"])
    bias = bias.at[:, 256:288].set(p["bf"])
    bias = bias.at[:, 384:640].set(b_gates)
    bias = bias.at[:, 640:641].set(p["bo"])

    return dict(
        w1=p["w1"].astype(bf16),
        w2=p["w2"].astype(bf16),
        wf=p["wf"].astype(bf16),
        wih=wih,
        whh=whh,
        wo=p["wo"].astype(bf16),
        bias=bias,
    )


@jax.jit
def lstm_model_forward(x_text, features, kp):
    B = x_text.shape[0]
    T = features.shape[1]
    # Time-major layout so the kernel's recurrence indexes the leading axis.
    feats_tbf = jnp.transpose(features, (1, 0, 2))           # (T, B, F)
    args = (x_text, feats_tbf,
            kp["w1"], kp["w2"], kp["wf"],
            kp["wih"], kp["whh"], kp["wo"],
            kp["bias"])
    vmem = pl.BlockSpec(memory_space=pltpu.MemorySpace.VMEM)
    # Gridless: ~70 KB of weights/biases + ~100 KB activations/scratch fit VMEM on
    # every generation (incl. v7x's 64 MiB).
    return pl.pallas_call(
        lstm_model_kernel,
        out_shape=jax.ShapeDtypeStruct((B, 1), jnp.float32),
        in_specs=[vmem] * len(args),
        out_specs=vmem,
        scratch_shapes=[pltpu.VMEM((T, B, 4 * H_LSTM), jnp.float32)],
    )(*args)


def init_params(key, input_text_size, input_features_size):
    """Deterministic PyTorch-style uniform init (scaled by 1/sqrt(fan_in)); weights are (in, out)."""
    ks = jax.random.split(key, 12)

    def dense(kw, kb, din, dout):
        s = 1.0 / np.sqrt(din)
        w = jax.random.uniform(kw, (din, dout), jnp.float32, -s, s)
        b = jax.random.uniform(kb, (1, dout), jnp.float32, -s, s)
        return w, b

    w1, b1 = dense(ks[0], ks[1], input_text_size, 128)
    w2, b2 = dense(ks[2], ks[3], 128, 64)
    wf, bf = dense(ks[4], ks[5], input_features_size, 32)

    sh = 1.0 / np.sqrt(H_LSTM)
    wih = jax.random.uniform(ks[6], (input_features_size, 4 * H_LSTM), jnp.float32, -sh, sh)
    whh = jax.random.uniform(ks[7], (H_LSTM, 4 * H_LSTM), jnp.float32, -sh, sh)
    bih = jax.random.uniform(ks[8], (1, 4 * H_LSTM), jnp.float32, -sh, sh)
    bhh = jax.random.uniform(ks[9], (1, 4 * H_LSTM), jnp.float32, -sh, sh)

    wo, bo = dense(ks[10], ks[11], 64 + 64 + 32, 1)

    return dict(w1=w1, b1=b1, w2=w2, b2=b2, wf=wf, bf=bf,
                wih=wih, whh=whh, bih=bih, bhh=bhh, wo=wo, bo=bo)


def reference_forward(x_text, features, p):
    """Pure-JAX reference mirroring the PyTorch forward with the same mixed precision
    (bf16 matmul operands, f32 accumulation, f32 elementwise / recurrent state)."""
    f32 = jnp.float32
    bf16 = jnp.bfloat16

    def mm(a, w):
        return jnp.dot(a.astype(bf16), w.astype(bf16), preferred_element_type=f32)

    h1 = jax.nn.relu(mm(x_text, p["w1"]) + p["b1"])
    h2 = jax.nn.relu(mm(h1, p["w2"]) + p["b2"])
    f_out = jax.nn.relu(mm(features[:, -1, :], p["wf"]) + p["bf"])

    B, T, F = features.shape
    H = H_LSTM
    h = jnp.zeros((B, H), f32)
    c = jnp.zeros((B, H), f32)
    bg = p["bih"] + p["bhh"]
    for t in range(T):
        g = mm(features[:, t, :], p["wih"]) + mm(h, p["whh"]) + bg
        i_g = jax.nn.sigmoid(g[:, 0:H])
        f_g = jax.nn.sigmoid(g[:, H:2 * H])
        g_g = jnp.tanh(g[:, 2 * H:3 * H])
        o_g = jax.nn.sigmoid(g[:, 3 * H:4 * H])
        c = f_g * c + i_g * g_g
        h = o_g * jnp.tanh(c)

    combined = jnp.concatenate([h2, h, f_out], axis=1)
    return jax.nn.sigmoid(mm(combined, p["wo"]) + p["bo"])


if __name__ == "__main__":
    B, T = 8, 8
    D_TEXT, D_FEAT = 32, 16

    key = jax.random.PRNGKey(0)
    kx, kf, kp = jax.random.split(key, 3)
    x_text = jax.random.normal(kx, (B, D_TEXT), jnp.float32)
    features = jax.random.normal(kf, (B, T, D_FEAT), jnp.float32)
    params = init_params(kp, D_TEXT, D_FEAT)
    kparams = prepare_params(params)

    out = lstm_model_forward(x_text, features, kparams)
    out = jax.block_until_ready(out)

    ref = reference_forward(x_text, features, params)
    assert out.shape == (B, 1)
    np.testing.assert_allclose(np.asarray(out), np.asarray(ref), rtol=1e-4, atol=1e-4)

    print("KERNEL_OK")
</pallas_src>

<mosaic_0001>
module attributes {stable_mosaic.version = 11 : i64} {
  func.func @lstm_model_kernel(%arg0: memref<8x32xf32, #tpu.memory_space<vmem>>, %arg1: memref<8x8x16xf32, #tpu.memory_space<vmem>>, %arg2: memref<32x128xbf16, #tpu.memory_space<vmem>>, %arg3: memref<128x64xbf16, #tpu.memory_space<vmem>>, %arg4: memref<16x32xbf16, #tpu.memory_space<vmem>>, %arg5: memref<16x256xbf16, #tpu.memory_space<vmem>>, %arg6: memref<64x256xbf16, #tpu.memory_space<vmem>>, %arg7: memref<160x1xbf16, #tpu.memory_space<vmem>>, %arg8: memref<1x768xf32, #tpu.memory_space<vmem>>, %arg9: memref<8x1xf32, #tpu.memory_space<vmem>>, %arg10: memref<8x8x256xf32, #tpu.memory_space<vmem>>) attributes {dimension_semantics = [], scalar_prefetch = 0 : i64, scratch_operands = 1 : i64, tpu.core_type = #tpu.core_type<tc>} {
    %c0 = arith.constant 0 : index
    %c0_0 = arith.constant 0 : index
    %c0_1 = arith.constant 0 : index
    %0 = vector.load %arg1[%c0, %c0_0, %c0_1] : memref<8x8x16xf32, #tpu.memory_space<vmem>>, vector<8x8x16xf32>
    %c0_2 = arith.constant 0 : index
    %c0_3 = arith.constant 0 : index
    %1 = vector.load %arg8[%c0_2, %c0_3] : memref<1x768xf32, #tpu.memory_space<vmem>>, vector<1x128xf32>
    %c0_4 = arith.constant 0 : index
    %c128 = arith.constant 128 : index
    %2 = vector.load %arg8[%c0_4, %c128] : memref<1x768xf32, #tpu.memory_space<vmem>>, vector<1x64xf32>
    %c0_5 = arith.constant 0 : index
    %c256 = arith.constant 256 : index
    %3 = vector.load %arg8[%c0_5, %c256] : memref<1x768xf32, #tpu.memory_space<vmem>>, vector<1x32xf32>
    %c0_6 = arith.constant 0 : index
    %c384 = arith.constant 384 : index
    %4 = vector.load %arg8[%c0_6, %c384] : memref<1x768xf32, #tpu.memory_space<vmem>>, vector<1x256xf32>
    %c0_7 = arith.constant 0 : index
    %c640 = arith.constant 640 : index
    %5 = vector.load %arg8[%c0_7, %c640] : memref<1x768xf32, #tpu.memory_space<vmem>>, vector<1x1xf32>
    %6 = vector.shape_cast %0 : vector<8x8x16xf32> to vector<64x16xf32>
    %7 = arith.truncf %6 : vector<64x16xf32> to vector<64x16xbf16>
    %c0_8 = arith.constant 0 : index
    %c0_9 = arith.constant 0 : index
    %8 = vector.load %arg5[%c0_8, %c0_9] : memref<16x256xbf16, #tpu.memory_space<vmem>>, vector<16x256xbf16>
    %cst = arith.constant dense<0.000000e+00> : vector<64x256xf32>
    %9 = tpu.matmul %7, %8, %cst {dimension_numbers = #tpu.dot_dimension_numbers<[1], [0], [0], [1], [0, 0, 1, 1], [], []>} : vector<64x16xbf16>, vector<16x256xbf16>, vector<64x256xf32> -> vector<64x256xf32>
    %10 = vector.broadcast %4 : vector<1x256xf32> to vector<64x256xf32>
    %11 = arith.addf %9, %10 : vector<64x256xf32>
    %12 = vector.shape_cast %11 : vector<64x256xf32> to vector<8x8x256xf32>
    %c0_10 = arith.constant 0 : index
    %c0_11 = arith.constant 0 : index
    %c0_12 = arith.constant 0 : index
    %13 = vector.load %arg10[%c0_10, %c0_11, %c0_12] : memref<8x8x256xf32, #tpu.memory_space<vmem>>, vector<8x8x256xf32>
    tpu.vector_store %arg10[%c0_10, %c0_11, %c0_12], %12 {strides = array<i32>} : memref<8x8x256xf32, #tpu.memory_space<vmem>>, vector<8x8x256xf32>,
    %c0_13 = arith.constant 0 : index
    %c0_14 = arith.constant 0 : index
    %14 = vector.load %arg0[%c0_13, %c0_14] : memref<8x32xf32, #tpu.memory_space<vmem>>, vector<8x32xf32>
    %15 = arith.truncf %14 : vector<8x32xf32> to vector<8x32xbf16>
    %c0_15 = arith.constant 0 : index
    %c0_16 = arith.constant 0 : index
    %16 = vector.load %arg2[%c0_15, %c0_16] : memref<32x128xbf16, #tpu.memory_space<vmem>>, vector<32x128xbf16>
    %cst_17 = arith.constant dense<0.000000e+00> : vector<8x128xf32>
    %17 = tpu.matmul %15, %16, %cst_17 {dimension_numbers = #tpu.dot_dimension_numbers<[1], [0], [0], [1], [0, 0, 1, 1], [], []>} : vector<8x32xbf16>, vector<32x128xbf16>, vector<8x128xf32> -> vector<8x128xf32>
    %18 = vector.broadcast %1 : vector<1x128xf32> to vector<8x128xf32>
    %19 = arith.addf %17, %18 : vector<8x128xf32>
    %cst_18 = arith.constant 0.000000e+00 : f32
    %20 = vector.broadcast %cst_18 : f32 to vector<8x128xf32>
    %21 = arith.maximumf %19, %20 : vector<8x128xf32>
    %22 = arith.truncf %21 : vector<8x128xf32> to vector<8x128xbf16>
    %c0_19 = arith.constant 0 : index
    %c0_20 = arith.constant 0 : index
    %23 = vector.load %arg3[%c0_19, %c0_20] : memref<128x64xbf16, #tpu.memory_space<vmem>>, vector<128x64xbf16>
    %cst_21 = arith.constant dense<0.000000e+00> : vector<8x64xf32>
    %24 = tpu.matmul %22, %23, %cst_21 {dimension_numbers = #tpu.dot_dimension_numbers<[1], [0], [0], [1], [0, 0, 1, 1], [], []>} : vector<8x128xbf16>, vector<128x64xbf16>, vector<8x64xf32> -> vector<8x64xf32>
    %25 = vector.broadcast %2 : vector<1x64xf32> to vector<8x64xf32>
    %26 = arith.addf %24, %25 : vector<8x64xf32>
    %cst_22 = arith.constant 0.000000e+00 : f32
    %27 = vector.broadcast %cst_22 : f32 to vector<8x64xf32>
    %28 = arith.maximumf %26, %27 : vector<8x64xf32>
    %29 = vector.extract_strided_slice %0 {offsets = [7, 0, 0], sizes = [1, 8, 16], strides = [1, 1, 1]} : vector<8x8x16xf32> to vector<1x8x16xf32>
    %30 = vector.shape_cast %29 : vector<1x8x16xf32> to vector<8x16xf32>
    %31 = arith.truncf %30 : vector<8x16xf32> to vector<8x16xbf16>
    %c0_23 = arith.constant 0 : index
    %c0_24 = arith.constant 0 : index
    %32 = vector.load %arg4[%c0_23, %c0_24] : memref<16x32xbf16, #tpu.memory_space<vmem>>, vector<16x32xbf16>
    %cst_25 = arith.constant dense<0.000000e+00> : vector<8x32xf32>
    %33 = tpu.matmul %31, %32, %cst_25 {dimension_numbers = #tpu.dot_dimension_numbers<[1], [0], [0], [1], [0, 0, 1, 1], [], []>} : vector<8x16xbf16>, vector<16x32xbf16>, vector<8x32xf32> -> vector<8x32xf32>
    %34 = vector.broadcast %3 : vector<1x32xf32> to vector<8x32xf32>
    %35 = arith.addf %33, %34 : vector<8x32xf32>
    %cst_26 = arith.constant 0.000000e+00 : f32
    %36 = vector.broadcast %cst_26 : f32 to vector<8x32xf32>
    %37 = arith.maximumf %35, %36 : vector<8x32xf32>
    %c0_27 = arith.constant 0 : index
    %c0_28 = arith.constant 0 : index
    %38 = vector.load %arg6[%c0_27, %c0_28] : memref<64x256xbf16, #tpu.memory_space<vmem>>, vector<64x256xbf16>
    %cst_29 = arith.constant 0.000000e+00 : f32
    %39 = vector.broadcast %cst_29 : f32 to vector<8x64xf32>
    %cst_30 = arith.constant 0.000000e+00 : f32
    %40 = vector.broadcast %cst_30 : f32 to vector<8x64xf32>
    %c0_i32 = arith.constant 0 : i32
    %41 = arith.index_cast %c0_i32 : i32 to index
    %c0_31 = arith.constant 0 : index
    %c0_32 = arith.constant 0 : index
    %42 = vector.load %arg10[%41, %c0_31, %c0_32] : memref<8x8x256xf32, #tpu.memory_space<vmem>>, vector<1x8x256xf32>
    %43 = vector.shape_cast %42 : vector<1x8x256xf32> to vector<8x256xf32>
    %44 = arith.truncf %39 : vector<8x64xf32> to vector<8x64xbf16>
    %cst_33 = arith.constant dense<0.000000e+00> : vector<8x256xf32>
    %45 = tpu.matmul %44, %38, %cst_33 {dimension_numbers = #tpu.dot_dimension_numbers<[1], [0], [0], [1], [0, 0, 1, 1], [], []>} : vector<8x64xbf16>, vector<64x256xbf16>, vector<8x256xf32> -> vector<8x256xf32>
    %46 = arith.addf %43, %45 : vector<8x256xf32>
    %47 = arith.negf %46 : vector<8x256xf32>
    %48 = math.exp %47 : vector<8x256xf32>
    %cst_34 = arith.constant 1.000000e+00 : f32
    %49 = vector.broadcast %cst_34 : f32 to vector<8x256xf32>
    %50 = arith.addf %49, %48 : vector<8x256xf32>
    %51 = arith.divf %49, %50 : vector<8x256xf32>
    %52 = vector.extract_strided_slice %51 {offsets = [0, 0], sizes = [8, 64], strides = [1, 1]} : vector<8x256xf32> to vector<8x64xf32>
    %53 = vector.extract_strided_slice %51 {offsets = [0, 64], sizes = [8, 64], strides = [1, 1]} : vector<8x256xf32> to vector<8x64xf32>
    %54 = vector.extract_strided_slice %51 {offsets = [0, 128], sizes = [8, 64], strides = [1, 1]} : vector<8x256xf32> to vector<8x64xf32>
    %cst_35 = arith.constant 2.000000e+00 : f32
    %55 = vector.broadcast %cst_35 : f32 to vector<8x64xf32>
    %56 = arith.mulf %55, %54 : vector<8x64xf32>
    %cst_36 = arith.constant 1.000000e+00 : f32
    %57 = vector.broadcast %cst_36 : f32 to vector<8x64xf32>
    %58 = arith.subf %56, %57 : vector<8x64xf32>
    %59 = vector.extract_strided_slice %51 {offsets = [0, 192], sizes = [8, 64], strides = [1, 1]} : vector<8x256xf32> to vector<8x64xf32>
    %60 = arith.mulf %53, %40 : vector<8x64xf32>
    %61 = arith.mulf %52, %58 : vector<8x64xf32>
    %62 = arith.addf %60, %61 : vector<8x64xf32>
    %63 = math.tanh %62 : vector<8x64xf32>
    %64 = arith.mulf %59, %63 : vector<8x64xf32>
    %c1_i32 = arith.constant 1 : i32
    %65 = arith.index_cast %c1_i32 : i32 to index
    %c0_37 = arith.constant 0 : index
    %c0_38 = arith.constant 0 : index
    %66 = vector.load %arg10[%65, %c0_37, %c0_38] : memref<8x8x256xf32, #tpu.memory_space<vmem>>, vector<1x8x256xf32>
    %67 = vector.shape_cast %66 : vector<1x8x256xf32> to vector<8x256xf32>
    %68 = arith.truncf %64 : vector<8x64xf32> to vector<8x64xbf16>
    %cst_39 = arith.constant dense<0.000000e+00> : vector<8x256xf32>
    %69 = tpu.matmul %68, %38, %cst_39 {dimension_numbers = #tpu.dot_dimension_numbers<[1], [0], [0], [1], [0, 0, 1, 1], [], []>} : vector<8x64xbf16>, vector<64x256xbf16>, vector<8x256xf32> -> vector<8x256xf32>
    %70 = arith.addf %67, %69 : vector<8x256xf32>
    %71 = arith.negf %70 : vector<8x256xf32>
    %72 = math.exp %71 : vector<8x256xf32>
    %cst_40 = arith.constant 1.000000e+00 : f32
    %73 = vector.broadcast %cst_40 : f32 to vector<8x256xf32>
    %74 = arith.addf %73, %72 : vector<8x256xf32>
    %75 = arith.divf %73, %74 : vector<8x256xf32>
    %76 = vector.extract_strided_slice %75 {offsets = [0, 0], sizes = [8, 64], strides = [1, 1]} : vector<8x256xf32> to vector<8x64xf32>
    %77 = vector.extract_strided_slice %75 {offsets = [0, 64], sizes = [8, 64], strides = [1, 1]} : vector<8x256xf32> to vector<8x64xf32>
    %78 = vector.extract_strided_slice %75 {offsets = [0, 128], sizes = [8, 64], strides = [1, 1]} : vector<8x256xf32> to vector<8x64xf32>
    %cst_41 = arith.constant 2.000000e+00 : f32
    %79 = vector.broadcast %cst_41 : f32 to vector<8x64xf32>
    %80 = arith.mulf %79, %78 : vector<8x64xf32>
    %cst_42 = arith.constant 1.000000e+00 : f32
    %81 = vector.broadcast %cst_42 : f32 to vector<8x64xf32>
    %82 = arith.subf %80, %81 : vector<8x64xf32>
    %83 = vector.extract_strided_slice %75 {offsets = [0, 192], sizes = [8, 64], strides = [1, 1]} : vector<8x256xf32> to vector<8x64xf32>
    %84 = arith.mulf %77, %62 : vector<8x64xf32>
    %85 = arith.mulf %76, %82 : vector<8x64xf32>
    %86 = arith.addf %84, %85 : vector<8x64xf32>
    %87 = math.tanh %86 : vector<8x64xf32>
    %88 = arith.mulf %83, %87 : vector<8x64xf32>
    %c2_i32 = arith.constant 2 : i32
    %89 = arith.index_cast %c2_i32 : i32 to index
    %c0_43 = arith.constant 0 : index
    %c0_44 = arith.constant 0 : index
    %90 = vector.load %arg10[%89, %c0_43, %c0_44] : memref<8x8x256xf32, #tpu.memory_space<vmem>>, vector<1x8x256xf32>
    %91 = vector.shape_cast %90 : vector<1x8x256xf32> to vector<8x256xf32>
    %92 = arith.truncf %88 : vector<8x64xf32> to vector<8x64xbf16>
    %cst_45 = arith.constant dense<0.000000e+00> : vector<8x256xf32>
    %93 = tpu.matmul %92, %38, %cst_45 {dimension_numbers = #tpu.dot_dimension_numbers<[1], [0], [0], [1], [0, 0, 1, 1], [], []>} : vector<8x64xbf16>, vector<64x256xbf16>, vector<8x256xf32> -> vector<8x256xf32>
    %94 = arith.addf %91, %93 : vector<8x256xf32>
    %95 = arith.negf %94 : vector<8x256xf32>
    %96 = math.exp %95 : vector<8x256xf32>
    %cst_46 = arith.constant 1.000000e+00 : f32
    %97 = vector.broadcast %cst_46 : f32 to vector<8x256xf32>
    %98 = arith.addf %97, %96 : vector<8x256xf32>
    %99 = arith.divf %97, %98 : vector<8x256xf32>
    %100 = vector.extract_strided_slice %99 {offsets = [0, 0], sizes = [8, 64], strides = [1, 1]} : vector<8x256xf32> to vector<8x64xf32>
    %101 = vector.extract_strided_slice %99 {offsets = [0, 64], sizes = [8, 64], strides = [1, 1]} : vector<8x256xf32> to vector<8x64xf32>
    %102 = vector.extract_strided_slice %99 {offsets = [0, 128], sizes = [8, 64], strides = [1, 1]} : vector<8x256xf32> to vector<8x64xf32>
    %cst_47 = arith.constant 2.000000e+00 : f32
    %103 = vector.broadcast %cst_47 : f32 to vector<8x64xf32>
    %104 = arith.mulf %103, %102 : vector<8x64xf32>
    %cst_48 = arith.constant 1.000000e+00 : f32
    %105 = vector.broadcast %cst_48 : f32 to vector<8x64xf32>
    %106 = arith.subf %104, %105 : vector<8x64xf32>
    %107 = vector.extract_strided_slice %99 {offsets = [0, 192], sizes = [8, 64], strides = [1, 1]} : vector<8x256xf32> to vector<8x64xf32>
    %108 = arith.mulf %101, %86 : vector<8x64xf32>
    %109 = arith.mulf %100, %106 : vector<8x64xf32>
    %110 = arith.addf %108, %109 : vector<8x64xf32>
    %111 = math.tanh %110 : vector<8x64xf32>
    %112 = arith.mulf %107, %111 : vector<8x64xf32>
    %c3_i32 = arith.constant 3 : i32
    %113 = arith.index_cast %c3_i32 : i32 to index
    %c0_49 = arith.constant 0 : index
    %c0_50 = arith.constant 0 : index
    %114 = vector.load %arg10[%113, %c0_49, %c0_50] : memref<8x8x256xf32, #tpu.memory_space<vmem>>, vector<1x8x256xf32>
    %115 = vector.shape_cast %114 : vector<1x8x256xf32> to vector<8x256xf32>
    %116 = arith.truncf %112 : vector<8x64xf32> to vector<8x64xbf16>
    %cst_51 = arith.constant dense<0.000000e+00> : vector<8x256xf32>
    %117 = tpu.matmul %116, %38, %cst_51 {dimension_numbers = #tpu.dot_dimension_numbers<[1], [0], [0], [1], [0, 0, 1, 1], [], []>} : vector<8x64xbf16>, vector<64x256xbf16>, vector<8x256xf32> -> vector<8x256xf32>
    %118 = arith.addf %115, %117 : vector<8x256xf32>
    %119 = arith.negf %118 : vector<8x256xf32>
    %120 = math.exp %119 : vector<8x256xf32>
    %cst_52 = arith.constant 1.000000e+00 : f32
    %121 = vector.broadcast %cst_52 : f32 to vector<8x256xf32>
    %122 = arith.addf %121, %120 : vector<8x256xf32>
    %123 = arith.divf %121, %122 : vector<8x256xf32>
    %124 = vector.extract_strided_slice %123 {offsets = [0, 0], sizes = [8, 64], strides = [1, 1]} : vector<8x256xf32> to vector<8x64xf32>
    %125 = vector.extract_strided_slice %123 {offsets = [0, 64], sizes = [8, 64], strides = [1, 1]} : vector<8x256xf32> to vector<8x64xf32>
    %126 = vector.extract_strided_slice %123 {offsets = [0, 128], sizes = [8, 64], strides = [1, 1]} : vector<8x256xf32> to vector<8x64xf32>
    %cst_53 = arith.constant 2.000000e+00 : f32
    %127 = vector.broadcast %cst_53 : f32 to vector<8x64xf32>
    %128 = arith.mulf %127, %126 : vector<8x64xf32>
    %cst_54 = arith.constant 1.000000e+00 : f32
    %129 = vector.broadcast %cst_54 : f32 to vector<8x64xf32>
    %130 = arith.subf %128, %129 : vector<8x64xf32>
    %131 = vector.extract_strided_slice %123 {offsets = [0, 192], sizes = [8, 64], strides = [1, 1]} : vector<8x256xf32> to vector<8x64xf32>
    %132 = arith.mulf %125, %110 : vector<8x64xf32>
    %133 = arith.mulf %124, %130 : vector<8x64xf32>
    %134 = arith.addf %132, %133 : vector<8x64xf32>
    %135 = math.tanh %134 : vector<8x64xf32>
    %136 = arith.mulf %131, %135 : vector<8x64xf32>
    %c4_i32 = arith.constant 4 : i32
    %137 = arith.index_cast %c4_i32 : i32 to index
    %c0_55 = arith.constant 0 : index
    %c0_56 = arith.constant 0 : index
    %138 = vector.load %arg10[%137, %c0_55, %c0_56] : memref<8x8x256xf32, #tpu.memory_space<vmem>>, vector<1x8x256xf32>
    %139 = vector.shape_cast %138 : vector<1x8x256xf32> to vector<8x256xf32>
    %140 = arith.truncf %136 : vector<8x64xf32> to vector<8x64xbf16>
    %cst_57 = arith.constant dense<0.000000e+00> : vector<8x256xf32>
    %141 = tpu.matmul %140, %38, %cst_57 {dimension_numbers = #tpu.dot_dimension_numbers<[1], [0], [0], [1], [0, 0, 1, 1], [], []>} : vector<8x64xbf16>, vector<64x256xbf16>, vector<8x256xf32> -> vector<8x256xf32>
    %142 = arith.addf %139, %141 : vector<8x256xf32>
    %143 = arith.negf %142 : vector<8x256xf32>
    %144 = math.exp %143 : vector<8x256xf32>
    %cst_58 = arith.constant 1.000000e+00 : f32
    %145 = vector.broadcast %cst_58 : f32 to vector<8x256xf32>
    %146 = arith.addf %145, %144 : vector<8x256xf32>
    %147 = arith.divf %145, %146 : vector<8x256xf32>
    %148 = vector.extract_strided_slice %147 {offsets = [0, 0], sizes = [8, 64], strides = [1, 1]} : vector<8x256xf32> to vector<8x64xf32>
    %149 = vector.extract_strided_slice %147 {offsets = [0, 64], sizes = [8, 64], strides = [1, 1]} : vector<8x256xf32> to vector<8x64xf32>
    %150 = vector.extract_strided_slice %147 {offsets = [0, 128], sizes = [8, 64], strides = [1, 1]} : vector<8x256xf32> to vector<8x64xf32>
    %cst_59 = arith.constant 2.000000e+00 : f32
    %151 = vector.broadcast %cst_59 : f32 to vector<8x64xf32>
    %152 = arith.mulf %151, %150 : vector<8x64xf32>
    %cst_60 = arith.constant 1.000000e+00 : f32
    %153 = vector.broadcast %cst_60 : f32 to vector<8x64xf32>
    %154 = arith.subf %152, %153 : vector<8x64xf32>
    %155 = vector.extract_strided_slice %147 {offsets = [0, 192], sizes = [8, 64], strides = [1, 1]} : vector<8x256xf32> to vector<8x64xf32>
    %156 = arith.mulf %149, %134 : vector<8x64xf32>
    %157 = arith.mulf %148, %154 : vector<8x64xf32>
    %158 = arith.addf %156, %157 : vector<8x64xf32>
    %159 = math.tanh %158 : vector<8x64xf32>
    %160 = arith.mulf %155, %159 : vector<8x64xf32>
    %c5_i32 = arith.constant 5 : i32
    %161 = arith.index_cast %c5_i32 : i32 to index
    %c0_61 = arith.constant 0 : index
    %c0_62 = arith.constant 0 : index
    %162 = vector.load %arg10[%161, %c0_61, %c0_62] : memref<8x8x256xf32, #tpu.memory_space<vmem>>, vector<1x8x256xf32>
    %163 = vector.shape_cast %162 : vector<1x8x256xf32> to vector<8x256xf32>
    %164 = arith.truncf %160 : vector<8x64xf32> to vector<8x64xbf16>
    %cst_63 = arith.constant dense<0.000000e+00> : vector<8x256xf32>
    %165 = tpu.matmul %164, %38, %cst_63 {dimension_numbers = #tpu.dot_dimension_numbers<[1], [0], [0], [1], [0, 0, 1, 1], [], []>} : vector<8x64xbf16>, vector<64x256xbf16>, vector<8x256xf32> -> vector<8x256xf32>
    %166 = arith.addf %163, %165 : vector<8x256xf32>
    %167 = arith.negf %166 : vector<8x256xf32>
    %168 = math.exp %167 : vector<8x256xf32>
    %cst_64 = arith.constant 1.000000e+00 : f32
    %169 = vector.broadcast %cst_64 : f32 to vector<8x256xf32>
    %170 = arith.addf %169, %168 : vector<8x256xf32>
    %171 = arith.divf %169, %170 : vector<8x256xf32>
    %172 = vector.extract_strided_slice %171 {offsets = [0, 0], sizes = [8, 64], strides = [1, 1]} : vector<8x256xf32> to vector<8x64xf32>
    %173 = vector.extract_strided_slice %171 {offsets = [0, 64], sizes = [8, 64], strides = [1, 1]} : vector<8x256xf32> to vector<8x64xf32>
    %174 = vector.extract_strided_slice %171 {offsets = [0, 128], sizes = [8, 64], strides = [1, 1]} : vector<8x256xf32> to vector<8x64xf32>
    %cst_65 = arith.constant 2.000000e+00 : f32
    %175 = vector.broadcast %cst_65 : f32 to vector<8x64xf32>
    %176 = arith.mulf %175, %174 : vector<8x64xf32>
    %cst_66 = arith.constant 1.000000e+00 : f32
    %177 = vector.broadcast %cst_66 : f32 to vector<8x64xf32>
    %178 = arith.subf %176, %177 : vector<8x64xf32>
    %179 = vector.extract_strided_slice %171 {offsets = [0, 192], sizes = [8, 64], strides = [1, 1]} : vector<8x256xf32> to vector<8x64xf32>
    %180 = arith.mulf %173, %158 : vector<8x64xf32>
    %181 = arith.mulf %172, %178 : vector<8x64xf32>
    %182 = arith.addf %180, %181 : vector<8x64xf32>
    %183 = math.tanh %182 : vector<8x64xf32>
    %184 = arith.mulf %179, %183 : vector<8x64xf32>
    %c6_i32 = arith.constant 6 : i32
    %185 = arith.index_cast %c6_i32 : i32 to index
    %c0_67 = arith.constant 0 : index
    %c0_68 = arith.constant 0 : index
    %186 = vector.load %arg10[%185, %c0_67, %c0_68] : memref<8x8x256xf32, #tpu.memory_space<vmem>>, vector<1x8x256xf32>
    %187 = vector.shape_cast %186 : vector<1x8x256xf32> to vector<8x256xf32>
    %188 = arith.truncf %184 : vector<8x64xf32> to vector<8x64xbf16>
    %cst_69 = arith.constant dense<0.000000e+00> : vector<8x256xf32>
    %189 = tpu.matmul %188, %38, %cst_69 {dimension_numbers = #tpu.dot_dimension_numbers<[1], [0], [0], [1], [0, 0, 1, 1], [], []>} : vector<8x64xbf16>, vector<64x256xbf16>, vector<8x256xf32> -> vector<8x256xf32>
    %190 = arith.addf %187, %189 : vector<8x256xf32>
    %191 = arith.negf %190 : vector<8x256xf32>
    %192 = math.exp %191 : vector<8x256xf32>
    %cst_70 = arith.constant 1.000000e+00 : f32
    %193 = vector.broadcast %cst_70 : f32 to vector<8x256xf32>
    %194 = arith.addf %193, %192 : vector<8x256xf32>
    %195 = arith.divf %193, %194 : vector<8x256xf32>
    %196 = vector.extract_strided_slice %195 {offsets = [0, 0], sizes = [8, 64], strides = [1, 1]} : vector<8x256xf32> to vector<8x64xf32>
    %197 = vector.extract_strided_slice %195 {offsets = [0, 64], sizes = [8, 64], strides = [1, 1]} : vector<8x256xf32> to vector<8x64xf32>
    %198 = vector.extract_strided_slice %195 {offsets = [0, 128], sizes = [8, 64], strides = [1, 1]} : vector<8x256xf32> to vector<8x64xf32>
    %cst_71 = arith.constant 2.000000e+00 : f32
    %199 = vector.broadcast %cst_71 : f32 to vector<8x64xf32>
    %200 = arith.mulf %199, %198 : vector<8x64xf32>
    %cst_72 = arith.constant 1.000000e+00 : f32
    %201 = vector.broadcast %cst_72 : f32 to vector<8x64xf32>
    %202 = arith.subf %200, %201 : vector<8x64xf32>
    %203 = vector.extract_strided_slice %195 {offsets = [0, 192], sizes = [8, 64], strides = [1, 1]} : vector<8x256xf32> to vector<8x64xf32>
    %204 = arith.mulf %197, %182 : vector<8x64xf32>
    %205 = arith.mulf %196, %202 : vector<8x64xf32>
    %206 = arith.addf %204, %205 : vector<8x64xf32>
    %207 = math.tanh %206 : vector<8x64xf32>
    %208 = arith.mulf %203, %207 : vector<8x64xf32>
    %c7_i32 = arith.constant 7 : i32
    %209 = arith.index_cast %c7_i32 : i32 to index
    %c0_73 = arith.constant 0 : index
    %c0_74 = arith.constant 0 : index
    %210 = vector.load %arg10[%209, %c0_73, %c0_74] : memref<8x8x256xf32, #tpu.memory_space<vmem>>, vector<1x8x256xf32>
    %211 = vector.shape_cast %210 : vector<1x8x256xf32> to vector<8x256xf32>
    %212 = arith.truncf %208 : vector<8x64xf32> to vector<8x64xbf16>
    %cst_75 = arith.constant dense<0.000000e+00> : vector<8x256xf32>
    %213 = tpu.matmul %212, %38, %cst_75 {dimension_numbers = #tpu.dot_dimension_numbers<[1], [0], [0], [1], [0, 0, 1, 1], [], []>} : vector<8x64xbf16>, vector<64x256xbf16>, vector<8x256xf32> -> vector<8x256xf32>
    %214 = arith.addf %211, %213 : vector<8x256xf32>
    %215 = arith.negf %214 : vector<8x256xf32>
    %216 = math.exp %215 : vector<8x256xf32>
    %cst_76 = arith.constant 1.000000e+00 : f32
    %217 = vector.broadcast %cst_76 : f32 to vector<8x256xf32>
    %218 = arith.addf %217, %216 : vector<8x256xf32>
    %219 = arith.divf %217, %218 : vector<8x256xf32>
    %220 = vector.extract_strided_slice %219 {offsets = [0, 0], sizes = [8, 64], strides = [1, 1]} : vector<8x256xf32> to vector<8x64xf32>
    %221 = vector.extract_strided_slice %219 {offsets = [0, 64], sizes = [8, 64], strides = [1, 1]} : vector<8x256xf32> to vector<8x64xf32>
    %222 = vector.extract_strided_slice %219 {offsets = [0, 128], sizes = [8, 64], strides = [1, 1]} : vector<8x256xf32> to vector<8x64xf32>
    %cst_77 = arith.constant 2.000000e+00 : f32
    %223 = vector.broadcast %cst_77 : f32 to vector<8x64xf32>
    %224 = arith.mulf %223, %222 : vector<8x64xf32>
    %cst_78 = arith.constant 1.000000e+00 : f32
    %225 = vector.broadcast %cst_78 : f32 to vector<8x64xf32>
    %226 = arith.subf %224, %225 : vector<8x64xf32>
    %227 = vector.extract_strided_slice %219 {offsets = [0, 192], sizes = [8, 64], strides = [1, 1]} : vector<8x256xf32> to vector<8x64xf32>
    %228 = arith.mulf %221, %206 : vector<8x64xf32>
    %229 = arith.mulf %220, %226 : vector<8x64xf32>
    %230 = arith.addf %228, %229 : vector<8x64xf32>
    %231 = math.tanh %230 : vector<8x64xf32>
    %232 = arith.mulf %227, %231 : vector<8x64xf32>
    %c8_i32 = arith.constant 8 : i32
    %c0_79 = arith.constant 0 : index
    %c0_80 = arith.constant 0 : index
    %233 = vector.load %arg7[%c0_79, %c0_80] : memref<160x1xbf16, #tpu.memory_space<vmem>>, vector<160x1xbf16>
    %234 = arith.truncf %28 : vector<8x64xf32> to vector<8x64xbf16>
    %235 = vector.extract_strided_slice %233 {offsets = [0, 0], sizes = [64, 1], strides = [1, 1]} : vector<160x1xbf16> to vector<64x1xbf16>
    %cst_81 = arith.constant dense<0.000000e+00> : vector<8x1xf32>
    %236 = tpu.matmul %234, %235, %cst_81 {dimension_numbers = #tpu.dot_dimension_numbers<[1], [0], [0], [1], [0, 0, 1, 1], [], []>} : vector<8x64xbf16>, vector<64x1xbf16>, vector<8x1xf32> -> vector<8x1xf32>
    %237 = arith.truncf %232 : vector<8x64xf32> to vector<8x64xbf16>
    %238 = vector.extract_strided_slice %233 {offsets = [64, 0], sizes = [64, 1], strides = [1, 1]} : vector<160x1xbf16> to vector<64x1xbf16>
    %cst_82 = arith.constant dense<0.000000e+00> : vector<8x1xf32>
    %239 = tpu.matmul %237, %238, %cst_82 {dimension_numbers = #tpu.dot_dimension_numbers<[1], [0], [0], [1], [0, 0, 1, 1], [], []>} : vector<8x64xbf16>, vector<64x1xbf16>, vector<8x1xf32> -> vector<8x1xf32>
    %240 = arith.addf %236, %239 : vector<8x1xf32>
    %241 = arith.truncf %37 : vector<8x32xf32> to vector<8x32xbf16>
    %242 = vector.extract_strided_slice %233 {offsets = [128, 0], sizes = [32, 1], strides = [1, 1]} : vector<160x1xbf16> to vector<32x1xbf16>
    %cst_83 = arith.constant dense<0.000000e+00> : vector<8x1xf32>
    %243 = tpu.matmul %241, %242, %cst_83 {dimension_numbers = #tpu.dot_dimension_numbers<[1], [0], [0], [1], [0, 0, 1, 1], [], []>} : vector<8x32xbf16>, vector<32x1xbf16>, vector<8x1xf32> -> vector<8x1xf32>
    %244 = arith.addf %240, %243 : vector<8x1xf32>
    %245 = vector.broadcast %5 : vector<1x1xf32> to vector<8x1xf32>
    %246 = arith.addf %244, %245 : vector<8x1xf32>
    %247 = arith.negf %246 : vector<8x1xf32>
    %248 = math.exp %247 : vector<8x1xf32>
    %cst_84 = arith.constant 1.000000e+00 : f32
    %249 = vector.broadcast %cst_84 : f32 to vector<8x1xf32>
    %250 = arith.addf %249, %248 : vector<8x1xf32>
    %251 = arith.divf %249, %250 : vector<8x1xf32>
    %c0_85 = arith.constant 0 : index
    %c0_86 = arith.constant 0 : index
    %252 = vector.load %arg9[%c0_85, %c0_86] : memref<8x1xf32, #tpu.memory_space<vmem>>, vector<8x1xf32>
    tpu.vector_store %arg9[%c0_85, %c0_86], %251 {strides = array<i32>} : memref<8x1xf32, #tpu.memory_space<vmem>>, vector<8x1xf32>,
    return
  }
}

</mosaic_0001>

<llo_original>
// kernel: lstm_model_forward.1
$region0: #{lstm_model_forward.1}
  #allocation0 [shape = 'u32[]', space=smem, size = 0x4, offset = 0x4, fixed_abs, tag = 'smem constant byte address 0x4 - core index']
  #allocation1 [shape = 'u32[144,128]{1,0:T(1,128)}', space=vmem, size = 0x12000, scoped, tag = 'internal scratch']
  #allocation2 [shape = 'f32[8,8,256]{2,1,0:T(8,128)}', space=vmem, size = 0x10000, scoped, tag = 'scratch operand']
  %s0 = inlined_call_operand.vmem [shape: f32[8,32], index: 0, kind: input, shape index: {}]
  %s1 = inlined_call_operand.vmem [shape: f32[8,8,16], index: 1, kind: input, shape index: {}]
  %s2 = inlined_call_operand.vmem [shape: bf16[32,128], index: 2, kind: input, shape index: {}]
  %s3 = inlined_call_operand.vmem [shape: bf16[128,64], index: 3, kind: input, shape index: {}]
  %s4 = inlined_call_operand.vmem [shape: bf16[16,32], index: 4, kind: input, shape index: {}]
  %s5 = inlined_call_operand.vmem [shape: bf16[16,256], index: 5, kind: input, shape index: {}]
  %s6 = inlined_call_operand.vmem [shape: bf16[64,256], index: 6, kind: input, shape index: {}]
  %s7 = inlined_call_operand.vmem [shape: bf16[160,1], index: 7, kind: input, shape index: {}]
  %s8 = inlined_call_operand.vmem [shape: f32[1,768], index: 8, kind: input, shape index: {}]
  %s9 = inlined_call_operand.vmem [shape: f32[8,1], index: 9, kind: output, shape index: {}]
  %s10 = sld [smem:[#allocation0]]
  $region46: #{lstm_model_forward.1} parent=0
    _
  %s12 = ssub.s32 1, %s10
  %s13 = scalar_select 0, %s12, %s10
  // Predicated region
  $region2: #{lstm_model_forward.1} parent=0 // pred_check
    _
  $region3: #{lstm_model_forward.1} parent=0 // pred_check_branch
    %15 = sbr.rel (0) target = $region5
  $region4: #{lstm_model_forward.1} parent=0 // pred_region
    _
  $region5: #{lstm_model_forward.1} parent=0 // pred_fallthru
    _
  // Predicated region
  $region6: #{lstm_model_forward.1} parent=0 // pred_check
    _
  $region7: #{lstm_model_forward.1} parent=0 // pred_check_branch
    %17 = sbr.rel (0) target = $region9
  $region8: #{lstm_model_forward.1} parent=0 // pred_region
    _
  $region9: #{lstm_model_forward.1} parent=0 // pred_fallthru
    _
  // Predicated region
  $region10: #{lstm_model_forward.1} parent=0 // pred_check
    _
  $region11: #{lstm_model_forward.1} parent=0 // pred_check_branch
    %19 = sbr.rel (0) target = $region13
  $region12: #{lstm_model_forward.1} parent=0 // pred_region
    _
  $region13: #{lstm_model_forward.1} parent=0 // pred_fallthru
    _
  // Predicated region
  $region14: #{lstm_model_forward.1} parent=0 // pred_check
    _
  $region15: #{lstm_model_forward.1} parent=0 // pred_check_branch
    %21 = sbr.rel (0) target = $region17
  $region16: #{lstm_model_forward.1} parent=0 // pred_region
    _
  $region17: #{lstm_model_forward.1} parent=0 // pred_fallthru
    _
  // Predicated region
  $region18: #{lstm_model_forward.1} parent=0 // pred_check
    _
  $region19: #{lstm_model_forward.1} parent=0 // pred_check_branch
    %23 = sbr.rel (0) target = $region21
  $region20: #{lstm_model_forward.1} parent=0 // pred_region
    _
  $region21: #{lstm_model_forward.1} parent=0 // pred_fallthru
    _
  // Predicated region
  $region22: #{lstm_model_forward.1} parent=0 // pred_check
    _
  $region23: #{lstm_model_forward.1} parent=0 // pred_check_branch
    %25 = sbr.rel (0) target = $region25
  $region24: #{lstm_model_forward.1} parent=0 // pred_region
    _
  $region25: #{lstm_model_forward.1} parent=0 // pred_fallthru
    _
  // Predicated region
  $region26: #{lstm_model_forward.1} parent=0 // pred_check
    _
  $region27: #{lstm_model_forward.1} parent=0 // pred_check_branch
    %27 = sbr.rel (0) target = $region29
  $region28: #{lstm_model_forward.1} parent=0 // pred_region
    _
  $region29: #{lstm_model_forward.1} parent=0 // pred_fallthru
    _
  // Predicated region
  $region30: #{lstm_model_forward.1} parent=0 // pred_check
    _
  $region31: #{lstm_model_forward.1} parent=0 // pred_check_branch
    %29 = sbr.rel (0) target = $region33
  $region32: #{lstm_model_forward.1} parent=0 // pred_region
    _
  $region33: #{lstm_model_forward.1} parent=0 // pred_fallthru
    _
  // Predicated region
  $region34: #{lstm_model_forward.1} parent=0 // pred_check
    _
  $region35: #{lstm_model_forward.1} parent=0 // pred_check_branch
    %31 = sbr.rel (0) target = $region37
  $region36: #{lstm_model_forward.1} parent=0 // pred_region
    _
  $region37: #{lstm_model_forward.1} parent=0 // pred_fallthru
    _
  %v33 = vld [vmem:[%s1] sm:$0xff]
  %v34 = vld [vmem:[%s1 + $0x8] sm:$0xff]
  %v35 = vld [vmem:[%s1 + $0x10] sm:$0xff]
  %v36 = vld [vmem:[%s1 + $0x18] sm:$0xff]
  %v37 = vld [vmem:[%s1 + $0x20] sm:$0xff]
  %v38 = vld [vmem:[%s1 + $0x28] sm:$0xff]
  %v39 = vld [vmem:[%s1 + $0x30] sm:$0xff]
  %v40 = vld [vmem:[%s1 + $0x38] sm:$0xff]
  %v41 = vld [vmem:[%s8] sm:$0x1]
  %v42 = vld [vmem:[%s8 + $0x1] sm:$0x1]
  %v43 = vld [vmem:[%s8 + $0x2] sm:$0x1]
  %v44 = vld [vmem:[%s8 + $0x3] sm:$0x3]
  %v45 = vld [vmem:[%s8 + $0x5] sm:$0x1]
  %v46 = vpack.c.bf16 %v34, %v33
  %v47 = vpack.c.bf16 %v36, %v35
  %v48 = vpack.c.bf16 %v38, %v37
  %v49 = vpack.c.bf16 %v40, %v39
  %v50 = vld [vmem:[%s5] sm:$0xff]
  %v51 = vld [vmem:[%s5 + $0x8] sm:$0xff]
  %v53 = vlaneseq
  %v54 = vshrl.u32 %v53, 7
  %v55 = vsub.s32 0, %v54
  %v56 = vrot.slane %v44, %v55
  %v57 = vlaneseq
  %v58 = vshrl.u32 %v57, 7
  %v59 = vsub.s32 1, %v58
  %v60 = vrot.slane %v44, %v59
  %v65 = vunpack.c.l.b16 %v50
  %v66 = vunpack.c.h.b16 %v50
  %v67 = vunpack.c.l.b16 %v51
  %v68 = vunpack.c.h.b16 %v51
  %v69 = vpack.c.b16 %v67, %v65
  %v70 = vpack.c.b16 %v68, %v66
  %vm73 = vcmask 130048
  %v75 = vsel %vm73, %v46, 0
  %v78 = vsel %vm73, %v47, 0
  %v81 = vsel %vm73, %v48, 0
  %v84 = vsel %vm73, %v49, 0
  %86 = vmatprep.subr.bf16.mxu0 %v70
  %87 = vmatpush1.bf16.msra.mxu0 %v69
  %88 = vmatprep.subr.bf16.mxu0 0
  %89 = vmatpush1.bf16.msra.mxu0 0
  %90 = vmatprep.subr.bf16.mxu0 0
  %91 = vmatpush1.bf16.msra.mxu0 0
  %92 = vmatprep.subr.bf16.mxu0 0
  %93 = vmatpush1.bf16.msra.mxu0 0
  %94 = vmatprep.subr.bf16.mxu0 0
  %95 = vmatpush1.bf16.msra.mxu0 0
  %96 = vmatprep.subr.bf16.mxu0 0
  %97 = vmatpush1.bf16.msra.mxu0 0
  %98 = vmatprep.subr.bf16.mxu0 0
  %99 = vmatpush1.bf16.msra.mxu0 0
  %100 = vmatprep.subr.bf16.mxu0 0
  %101 = vmatpush1.bf16.msra.mxu0 0
  %102 = vmatprep.subr.bf16.mxu0 0
  %103 = vmatpush1.bf16.msra.mxu0 0
  %104 = vmatprep.subr.bf16.mxu0 0
  %105 = vmatpush1.bf16.msra.mxu0 0
  %106 = vmatprep.subr.bf16.mxu0 0
  %107 = vmatpush1.bf16.msra.mxu0 0
  %108 = vmatprep.subr.bf16.mxu0 0
  %109 = vmatpush1.bf16.msra.mxu0 0
  %110 = vmatprep.subr.bf16.mxu0 0
  %111 = vmatpush1.bf16.msra.mxu0 0
  %112 = vmatprep.subr.bf16.mxu0 0
  %113 = vmatpush1.bf16.msra.mxu0 0
  %114 = vmatprep.subr.bf16.mxu0 0
  %115 = vmatpush1.bf16.msra.mxu0 0
  %116 = vmatprep.subr.bf16.mxu0 0
  %117 = vmatpush1.bf16.msra.mxu0 0
  %118 = vmatprep.mubr.bf16.mxu0 0
  %119 = vmatmul.mubr.bf16.gmra.mrb[0].mxu0 %v75
  %v120 = vpop.f32.mrb[0].mxu0
  %v121 = vadd.f32 %v56, %v120
  %v122 = vpop.f32.mrb[0].mxu0
  %v123 = vadd.f32 %v60, %v122
  %v124 = vpop.f32.mrb[0].mxu0
  %v125 = vadd.f32 %v56, %v124
  %v126 = vpop.f32.mrb[0].mxu0
  %v127 = vadd.f32 %v60, %v126
  %128 = vmatprep.mubr.bf16.mxu0 0
  %129 = vmatmul.mubr.bf16.gmra.mrb[0].mxu0 %v78
  %v130 = vpop.f32.mrb[0].mxu0
  %v131 = vadd.f32 %v56, %v130
  %v132 = vpop.f32.mrb[0].mxu0
  %v133 = vadd.f32 %v60, %v132
  %v134 = vpop.f32.mrb[0].mxu0
  %v135 = vadd.f32 %v56, %v134
  %v136 = vpop.f32.mrb[0].mxu0
  %v137 = vadd.f32 %v60, %v136
  %138 = vmatprep.mubr.bf16.mxu0 0
  %139 = vmatmul.mubr.bf16.gmra.mrb[0].mxu0 %v81
  %v140 = vpop.f32.mrb[0].mxu0
  %v141 = vadd.f32 %v56, %v140
  %v142 = vpop.f32.mrb[0].mxu0
  %v143 = vadd.f32 %v60, %v142
  %v144 = vpop.f32.mrb[0].mxu0
  %v145 = vadd.f32 %v56, %v144
  %v146 = vpop.f32.mrb[0].mxu0
  %v147 = vadd.f32 %v60, %v146
  %148 = vmatprep.mubr.bf16.mxu0 0
  %149 = vmatmul.mubr.bf16.gmra.mrb[0].mxu0 %v84
  %v150 = vpop.f32.mrb[0].mxu0
  %v151 = vadd.f32 %v56, %v150
  %v152 = vpop.f32.mrb[0].mxu0
  %v153 = vadd.f32 %v60, %v152
  %v154 = vpop.f32.mrb[0].mxu0
  %v155 = vadd.f32 %v56, %v154
  %v156 = vpop.f32.mrb[0].mxu0
  %v157 = vadd.f32 %v60, %v156
  %158 = vdwg.mxu0
  %159 = vst [vmem:[#allocation2] sm:$0xff] %v121
  %160 = vst [vmem:[#allocation2 + $0x8] sm:$0xff] %v123
  %161 = vst [vmem:[#allocation2 + $0x10] sm:$0xff] %v125
  %162 = vst [vmem:[#allocation2 + $0x18] sm:$0xff] %v127
  %163 = vst [vmem:[#allocation2 + $0x20] sm:$0xff] %v131
  %164 = vst [vmem:[#allocation2 + $0x28] sm:$0xff] %v133
  %165 = vst [vmem:[#allocation2 + $0x30] sm:$0xff] %v135
  %166 = vst [vmem:[#allocation2 + $0x38] sm:$0xff] %v137
  %167 = vst [vmem:[#allocation2 + $0x40] sm:$0xff] %v141
  %168 = vst [vmem:[#allocation2 + $0x48] sm:$0xff] %v143
  %169 = vst [vmem:[#allocation2 + $0x50] sm:$0xff] %v145
  %170 = vst [vmem:[#allocation2 + $0x58] sm:$0xff] %v147
  %171 = vst [vmem:[#allocation2 + $0x60] sm:$0xff] %v151
  %172 = vst [vmem:[#allocation2 + $0x68] sm:$0xff] %v153
  %173 = vst [vmem:[#allocation2 + $0x70] sm:$0xff] %v155
  %174 = vst [vmem:[#allocation2 + $0x78] sm:$0xff] %v157
  %v175 = vld [vmem:[%s0] sm:$0xff]
  %v176 = vpack.c.bf16 %v175, %v175
  %v177 = vld [vmem:[%s2] sm:$0xf]
  %v178 = vld [vmem:[%s2 + $0x4] sm:$0xf]
  %v179 = vld [vmem:[%s2 + $0x8] sm:$0xf]
  %v180 = vld [vmem:[%s2 + $0xc] sm:$0xf]
  %v182 = vlaneseq
  %v183 = vshrl.u32 %v182, 7
  %v184 = vsub.s32 0, %v183
  %v185 = vrot.slane %v41, %v184
  %v191 = vunpack.c.l.b16 %v177
  %v192 = vunpack.c.l.b16 %v178
  %v193 = vunpack.c.l.b16 %v179
  %v194 = vunpack.c.l.b16 %v180
  %v195 = vpack.c.b16 %v192, %v191
  %v196 = vpack.c.b16 %v194, %v193
  %vm199 = vcmask 261120
  %v201 = vsel %vm199, %v176, 0
  %203 = vmatprep.subr.bf16.mxu0 0
  %204 = vmatpush1.bf16.msra.mxu0 %v195
  %205 = vmatprep.subr.bf16.mxu0 0
  %206 = vmatpush1.bf16.msra.mxu0 %v196
  %207 = vmatprep.subr.bf16.mxu0 0
  %208 = vmatpush1.bf16.msra.mxu0 0
  %209 = vmatprep.subr.bf16.mxu0 0
  %210 = vmatpush1.bf16.msra.mxu0 0
  %211 = vmatprep.subr.bf16.mxu0 0
  %212 = vmatpush1.bf16.msra.mxu0 0
  %213 = vmatprep.subr.bf16.mxu0 0
  %214 = vmatpush1.bf16.msra.mxu0 0
  %215 = vmatprep.subr.bf16.mxu0 0
  %216 = vmatpush1.bf16.msra.mxu0 0
  %217 = vmatprep.subr.bf16.mxu0 0
  %218 = vmatpush1.bf16.msra.mxu0 0
  %219 = vmatprep.subr.bf16.mxu0 0
  %220 = vmatpush1.bf16.msra.mxu0 0
  %221 = vmatprep.subr.bf16.mxu0 0
  %222 = vmatpush1.bf16.msra.mxu0 0
  %223 = vmatprep.subr.bf16.mxu0 0
  %224 = vmatpush1.bf16.msra.mxu0 0
  %225 = vmatprep.subr.bf16.mxu0 0
  %226 = vmatpush1.bf16.msra.mxu0 0
  %227 = vmatprep.subr.bf16.mxu0 0
  %228 = vmatpush1.bf16.msra.mxu0 0
  %229 = vmatprep.subr.bf16.mxu0 0
  %230 = vmatpush1.bf16.msra.mxu0 0
  %231 = vmatprep.subr.bf16.mxu0 0
  %232 = vmatpush1.bf16.msra.mxu0 0
  %233 = vmatprep.subr.bf16.mxu0 0
  %234 = vmatpush1.bf16.msra.mxu0 0
  %235 = vmatprep.mubr.bf16.mxu0 0
  %236 = vmatmul.mubr.bf16.gmra.mrb[0].mxu0 %v201
  %v237 = vpop.f32.mrb[0].mxu0
  %v238 = vadd.f32 %v185, %v237
  %v239 = vpop.f32.mrb[0].mxu0
  %v240 = vpop.f32.mrb[0].mxu0
  %v241 = vpop.f32.mrb[0].mxu0
  %242 = vdwg.mxu0
  %v243 = vmax.f32 %v238, 0.0
  %v244 = vpack.c.bf16 %v243, %v243
  %v245 = vld [vmem:[%s3] sm:$0xf]
  %v246 = vld [vmem:[%s3 + $0x4] sm:$0xf]
  %v247 = vld [vmem:[%s3 + $0x8] sm:$0xf]
  %v248 = vld [vmem:[%s3 + $0xc] sm:$0xf]
  %v249 = vld [vmem:[%s3 + $0x10] sm:$0xf]
  %v250 = vld [vmem:[%s3 + $0x14] sm:$0xf]
  %v251 = vld [vmem:[%s3 + $0x18] sm:$0xf]
  %v252 = vld [vmem:[%s3 + $0x1c] sm:$0xf]
  %v253 = vld [vmem:[%s3 + $0x20] sm:$0xf]
  %v254 = vld [vmem:[%s3 + $0x24] sm:$0xf]
  %v255 = vld [vmem:[%s3 + $0x28] sm:$0xf]
  %v256 = vld [vmem:[%s3 + $0x2c] sm:$0xf]
  %v257 = vld [vmem:[%s3 + $0x30] sm:$0xf]
  %v258 = vld [vmem:[%s3 + $0x34] sm:$0xf]
  %v259 = vld [vmem:[%s3 + $0x38] sm:$0xf]
  %v260 = vld [vmem:[%s3 + $0x3c] sm:$0xf]
  %v262 = vlaneseq
  %v263 = vshrl.u32 %v262, 7
  %v264 = vsub.s32 0, %v263
  %v265 = vrot.slane %v42, %v264
  %v283 = vunpack.c.l.b16 %v245
  %v284 = vunpack.c.l.b16 %v246
  %v285 = vunpack.c.l.b16 %v247
  %v286 = vunpack.c.l.b16 %v248
  %v287 = vunpack.c.l.b16 %v249
  %v288 = vunpack.c.l.b16 %v250
  %v289 = vunpack.c.l.b16 %v251
  %v290 = vunpack.c.l.b16 %v252
  %v291 = vunpack.c.l.b16 %v253
  %v292 = vunpack.c.l.b16 %v254
  %v293 = vunpack.c.l.b16 %v255
  %v294 = vunpack.c.l.b16 %v256
  %v295 = vunpack.c.l.b16 %v257
  %v296 = vunpack.c.l.b16 %v258
  %v297 = vunpack.c.l.b16 %v259
  %v298 = vunpack.c.l.b16 %v260
  %v299 = vpack.c.b16 %v284, %v283
  %v300 = vpack.c.b16 %v286, %v285
  %v301 = vpack.c.b16 %v288, %v287
  %v302 = vpack.c.b16 %v290, %v289
  %v303 = vpack.c.b16 %v292, %v291
  %v304 = vpack.c.b16 %v294, %v293
  %v305 = vpack.c.b16 %v296, %v295
  %v306 = vpack.c.b16 %v298, %v297
  %315 = vmatprep.subr.bf16.mxu0 0
  %316 = vmatpush1.bf16.msra.mxu0 %v299
  %317 = vmatprep.subr.bf16.mxu0 0
  %318 = vmatpush1.bf16.msra.mxu0 %v300
  %319 = vmatprep.subr.bf16.mxu0 0
  %320 = vmatpush1.bf16.msra.mxu0 %v301
  %321 = vmatprep.subr.bf16.mxu0 0
  %322 = vmatpush1.bf16.msra.mxu0 %v302
  %323 = vmatprep.subr.bf16.mxu0 0
  %324 = vmatpush1.bf16.msra.mxu0 %v303
  %325 = vmatprep.subr.bf16.mxu0 0
  %326 = vmatpush1.bf16.msra.mxu0 %v304
  %327 = vmatprep.subr.bf16.mxu0 0
  %328 = vmatpush1.bf16.msra.mxu0 %v305
  %329 = vmatprep.subr.bf16.mxu0 0
  %330 = vmatpush1.bf16.msra.mxu0 %v306
  %331 = vmatprep.subr.bf16.mxu0 0
  %332 = vmatpush1.bf16.msra.mxu0 0
  %333 = vmatprep.subr.bf16.mxu0 0
  %334 = vmatpush1.bf16.msra.mxu0 0
  %335 = vmatprep.subr.bf16.mxu0 0
  %336 = vmatpush1.bf16.msra.mxu0 0
  %337 = vmatprep.subr.bf16.mxu0 0
  %338 = vmatpush1.bf16.msra.mxu0 0
  %339 = vmatprep.subr.bf16.mxu0 0
  %340 = vmatpush1.bf16.msra.mxu0 0
  %341 = vmatprep.subr.bf16.mxu0 0
  %342 = vmatpush1.bf16.msra.mxu0 0
  %343 = vmatprep.subr.bf16.mxu0 0
  %344 = vmatpush1.bf16.msra.mxu0 0
  %345 = vmatprep.subr.bf16.mxu0 0
  %346 = vmatpush1.bf16.msra.mxu0 0
  %347 = vmatprep.mubr.bf16.mxu0 0
  %348 = vmatmul.mubr.bf16.gmra.mrb[0].mxu0 %v244
  %v349 = vpop.f32.mrb[0].mxu0
  %v350 = vadd.f32 %v265, %v349
  %v351 = vpop.f32.mrb[0].mxu0
  %v352 = vpop.f32.mrb[0].mxu0
  %v353 = vpop.f32.mrb[0].mxu0
  %354 = vdwg.mxu0
  %v355 = vmax.f32 %v350, 0.0
  %v356 = vpack.c.bf16 %v40, %v40
  %v357 = vld [vmem:[%s4] sm:$0xf]
  %v358 = vld [vmem:[%s4 + $0x4] sm:$0xf]
  %v360 = vlaneseq
  %v361 = vshrl.u32 %v360, 7
  %v362 = vsub.s32 0, %v361
  %v363 = vrot.slane %v43, %v362
  %v367 = vunpack.c.l.b16 %v357
  %v368 = vunpack.c.l.b16 %v358
  %v369 = vpack.c.b16 %v368, %v367
  %v372 = vsel %vm73, %v356, 0
  %374 = vmatprep.subr.bf16.mxu0 0
  %375 = vmatpush1.bf16.msra.mxu0 %v369
  %376 = vmatprep.subr.bf16.mxu0 0
  %377 = vmatpush1.bf16.msra.mxu0 0
  %378 = vmatprep.subr.bf16.mxu0 0
  %379 = vmatpush1.bf16.msra.mxu0 0
  %380 = vmatprep.subr.bf16.mxu0 0
  %381 = vmatpush1.bf16.msra.mxu0 0
  %382 = vmatprep.subr.bf16.mxu0 0
  %383 = vmatpush1.bf16.msra.mxu0 0
  %384 = vmatprep.subr.bf16.mxu0 0
  %385 = vmatpush1.bf16.msra.mxu0 0
  %386 = vmatprep.subr.bf16.mxu0 0
  %387 = vmatpush1.bf16.msra.mxu0 0
  %388 = vmatprep.subr.bf16.mxu0 0
  %389 = vmatpush1.bf16.msra.mxu0 0
  %390 = vmatprep.subr.bf16.mxu0 0
  %391 = vmatpush1.bf16.msra.mxu0 0
  %392 = vmatprep.subr.bf16.mxu0 0
  %393 = vmatpush1.bf16.msra.mxu0 0
  %394 = vmatprep.subr.bf16.mxu0 0
  %395 = vmatpush1.bf16.msra.mxu0 0
  %396 = vmatprep.subr.bf16.mxu0 0
  %397 = vmatpush1.bf16.msra.mxu0 0
  %398 = vmatprep.subr.bf16.mxu0 0
  %399 = vmatpush1.bf16.msra.mxu0 0
  %400 = vmatprep.subr.bf16.mxu0 0
  %401 = vmatpush1.bf16.msra.mxu0 0
  %402 = vmatprep.subr.bf16.mxu0 0
  %403 = vmatpush1.bf16.msra.mxu0 0
  %404 = vmatprep.subr.bf16.mxu0 0
  %405 = vmatpush1.bf16.msra.mxu0 0
  %406 = vmatprep.mubr.bf16.mxu0 0
  %407 = vmatmul.mubr.bf16.gmra.mrb[0].mxu0 %v372
  %v408 = vpop.f32.mrb[0].mxu0
  %v409 = vadd.f32 %v363, %v408
  %v410 = vpop.f32.mrb[0].mxu0
  %v411 = vpop.f32.mrb[0].mxu0
  %v412 = vpop.f32.mrb[0].mxu0
  %413 = vdwg.mxu0
  %v414 = vmax.f32 %v409, 0.0
  %v415 = vld [vmem:[%s6] sm:$0xff]
  %v416 = vld [vmem:[%s6 + $0x8] sm:$0xff]
  %v417 = vld [vmem:[%s6 + $0x10] sm:$0xff]
  %v418 = vld [vmem:[%s6 + $0x18] sm:$0xff]
  %v419 = vld [vmem:[%s6 + $0x20] sm:$0xff]
  %v420 = vld [vmem:[%s6 + $0x28] sm:$0xff]
  %v421 = vld [vmem:[%s6 + $0x30] sm:$0xff]
  %v422 = vld [vmem:[%s6 + $0x38] sm:$0xff]
  %v423 = vld [vmem:[#allocation2] sm:$0xff]
  %v424 = vld [vmem:[#allocation2 + $0x8] sm:$0xff]
  %v433 = vunpack.c.l.b16 %v415
  %v434 = vunpack.c.h.b16 %v415
  %v435 = vunpack.c.l.b16 %v416
  %v436 = vunpack.c.h.b16 %v416
  %v437 = vunpack.c.l.b16 %v417
  %v438 = vunpack.c.h.b16 %v417
  %v439 = vunpack.c.l.b16 %v418
  %v440 = vunpack.c.h.b16 %v418
  %v441 = vunpack.c.l.b16 %v419
  %v442 = vunpack.c.h.b16 %v419
  %v443 = vunpack.c.l.b16 %v420
  %v444 = vunpack.c.h.b16 %v420
  %v445 = vunpack.c.l.b16 %v421
  %v446 = vunpack.c.h.b16 %v421
  %v447 = vunpack.c.l.b16 %v422
  %v448 = vunpack.c.h.b16 %v422
  %v449 = vpack.c.b16 %v435, %v433
  %v450 = vpack.c.b16 %v436, %v434
  %v451 = vpack.c.b16 %v439, %v437
  %v452 = vpack.c.b16 %v440, %v438
  %v453 = vpack.c.b16 %v443, %v441
  %v454 = vpack.c.b16 %v444, %v442
  %v455 = vpack.c.b16 %v447, %v445
  %v456 = vpack.c.b16 %v448, %v446
  %vm465 = vcmask 523264
  %v467 = vsel %vm465, 0, 0
  %469 = vmatprep.subr.bf16.mxu0 %v450
  %470 = vmatpush1.bf16.msra.mxu0 %v449
  %471 = vmatprep.subr.bf16.mxu0 %v452
  %472 = vmatpush1.bf16.msra.mxu0 %v451
  %473 = vmatprep.subr.bf16.mxu0 %v454
  %474 = vmatpush1.bf16.msra.mxu0 %v453
  %475 = vmatprep.subr.bf16.mxu0 %v456
  %476 = vmatpush1.bf16.msra.mxu0 %v455
  %477 = vmatprep.subr.bf16.mxu0 0
  %478 = vmatpush1.bf16.msra.mxu0 0
  %479 = vmatprep.subr.bf16.mxu0 0
  %480 = vmatpush1.bf16.msra.mxu0 0
  %481 = vmatprep.subr.bf16.mxu0 0
  %482 = vmatpush1.bf16.msra.mxu0 0
  %483 = vmatprep.subr.bf16.mxu0 0
  %484 = vmatpush1.bf16.msra.mxu0 0
  %485 = vmatprep.subr.bf16.mxu0 0
  %486 = vmatpush1.bf16.msra.mxu0 0
  %487 = vmatprep.subr.bf16.mxu0 0
  %488 = vmatpush1.bf16.msra.mxu0 0
  %489 = vmatprep.subr.bf16.mxu0 0
  %490 = vmatpush1.bf16.msra.mxu0 0
  %491 = vmatprep.subr.bf16.mxu0 0
  %492 = vmatpush1.bf16.msra.mxu0 0
  %493 = vmatprep.subr.bf16.mxu0 0
  %494 = vmatpush1.bf16.msra.mxu0 0
  %495 = vmatprep.subr.bf16.mxu0 0
  %496 = vmatpush1.bf16.msra.mxu0 0
  %497 = vmatprep.subr.bf16.mxu0 0
  %498 = vmatpush1.bf16.msra.mxu0 0
  %499 = vmatprep.subr.bf16.mxu0 0
  %500 = vmatpush1.bf16.msra.mxu0 0
  %501 = vmatprep.mubr.bf16.mxu0 0
  %502 = vmatmul.mubr.bf16.gmra.mrb[0].mxu0 %v467
  %v503 = vpop.f32.mrb[0].mxu0
  %v504 = vadd.f32 0.0, %v503
  %v505 = vpop.f32.mrb[0].mxu0
  %v506 = vadd.f32 0.0, %v505
  %v507 = vpop.f32.mrb[0].mxu0
  %v508 = vpop.f32.mrb[0].mxu0
  %509 = vdwg.mxu0
  %v510 = vadd.f32 %v423, %v504
  %v511 = vadd.f32 %v424, %v506
  %v512 = vxor.u32 %v510, 2147483648
  %v513 = vxor.u32 %v511, 2147483648
  %v514 = vmul.f32 %v512, 1.442695
  %v515 = vpow.pop %v514
  %v516 = vmul.f32 %v513, 1.442695
  %v517 = vpow.pop %v516
  %v518 = vadd.f32 %v515, 1.0
  %v519 = vadd.f32 %v517, 1.0
  %v520 = vrcp.pop %v518
  %v521 = vmul.f32 1.0, %v520
  %v522 = vrcp.pop %v519
  %v523 = vmul.f32 1.0, %v522
  %v524 = vmul.f32 %v523, 2.0
  %v525 = vsub.f32 %v524, 1.0
  %v526 = vmul.f32 %v521, 0.0
  %v527 = vmul.f32 %v521, %v525
  %529 = vrot.lane.b32.xlu0 %v527, 64
  %v530 = vpop.permute.xlu0 %529
  %v532 = vadd.f32 %v526, %v530
  %v533 = vtanh.pop %v532
  %v534 = vmul.f32 %v523, %v533
  %s535 = scalar_lea.vmem [#allocation2], 16
  %v536 = vld [vmem:[%s535] sm:$0xff]
  %v537 = vld [vmem:[%s535 + $0x8] sm:$0xff]
  %v538 = vpack.c.bf16 %v534, %v534
  %540 = vrot.lane.b32.xlu0 %v538, 64
  %v541 = vpop.permute.xlu0 %540
  %v543 = vsel %vm465, %v541, 0
  %545 = vmatprep.subr.bf16.mxu0 %v450
  %546 = vmatpush1.bf16.msra.mxu0 %v449
  %547 = vmatprep.subr.bf16.mxu0 %v452
  %548 = vmatpush1.bf16.msra.mxu0 %v451
  %549 = vmatprep.subr.bf16.mxu0 %v454
  %550 = vmatpush1.bf16.msra.mxu0 %v453
  %551 = vmatprep.subr.bf16.mxu0 %v456
  %552 = vmatpush1.bf16.msra.mxu0 %v455
  %553 = vmatprep.subr.bf16.mxu0 0
  %554 = vmatpush1.bf16.msra.mxu0 0
  %555 = vmatprep.subr.bf16.mxu0 0
  %556 = vmatpush1.bf16.msra.mxu0 0
  %557 = vmatprep.subr.bf16.mxu0 0
  %558 = vmatpush1.bf16.msra.mxu0 0
  %559 = vmatprep.subr.bf16.mxu0 0
  %560 = vmatpush1.bf16.msra.mxu0 0
  %561 = vmatprep.subr.bf16.mxu0 0
  %562 = vmatpush1.bf16.msra.mxu0 0
  %563 = vmatprep.subr.bf16.mxu0 0
  %564 = vmatpush1.bf16.msra.mxu0 0
  %565 = vmatprep.subr.bf16.mxu0 0
  %566 = vmatpush1.bf16.msra.mxu0 0
  %567 = vmatprep.subr.bf16.mxu0 0
  %568 = vmatpush1.bf16.msra.mxu0 0
  %569 = vmatprep.subr.bf16.mxu0 0
  %570 = vmatpush1.bf16.msra.mxu0 0
  %571 = vmatprep.subr.bf16.mxu0 0
  %572 = vmatpush1.bf16.msra.mxu0 0
  %573 = vmatprep.subr.bf16.mxu0 0
  %574 = vmatpush1.bf16.msra.mxu0 0
  %575 = vmatprep.subr.bf16.mxu0 0
  %576 = vmatpush1.bf16.msra.mxu0 0
  %577 = vmatprep.mubr.bf16.mxu0 0
  %578 = vmatmul.mubr.bf16.gmra.mrb[0].mxu0 %v543
  %v579 = vpop.f32.mrb[0].mxu0
  %v580 = vadd.f32 0.0, %v579
  %v581 = vpop.f32.mrb[0].mxu0
  %v582 = vadd.f32 0.0, %v581
  %v583 = vpop.f32.mrb[0].mxu0
  %v584 = vpop.f32.mrb[0].mxu0
  %585 = vdwg.mxu0
  %v586 = vadd.f32 %v536, %v580
  %v587 = vadd.f32 %v537, %v582
  %v588 = vxor.u32 %v586, 2147483648
  %v589 = vxor.u32 %v587, 2147483648
  %v590 = vmul.f32 %v588, 1.442695
  %v591 = vpow.pop %v590
  %v592 = vmul.f32 %v589, 1.442695
  %v593 = vpow.pop %v592
  %v594 = vadd.f32 %v591, 1.0
  %v595 = vadd.f32 %v593, 1.0
  %v596 = vrcp.pop %v594
  %v597 = vmul.f32 1.0, %v596
  %v598 = vrcp.pop %v595
  %v599 = vmul.f32 1.0, %v598
  %v600 = vmul.f32 %v599, 2.0
  %v601 = vsub.f32 %v600, 1.0
  %v602 = vmul.f32 %v597, %v532
  %v603 = vmul.f32 %v597, %v601
  %605 = vrot.lane.b32.xlu0 %v603, 64
  %v606 = vpop.permute.xlu0 %605
  %v608 = vadd.f32 %v602, %v606
  %v609 = vtanh.pop %v608
  %v610 = vmul.f32 %v599, %v609
  %s611 = scalar_lea.vmem [#allocation2], 32
  %v612 = vld [vmem:[%s611] sm:$0xff]
  %v613 = vld [vmem:[%s611 + $0x8] sm:$0xff]
  %v614 = vpack.c.bf16 %v610, %v610
  %616 = vrot.lane.b32.xlu0 %v614, 64
  %v617 = vpop.permute.xlu0 %616
  %v619 = vsel %vm465, %v617, 0
  %621 = vmatprep.subr.bf16.mxu0 %v450
  %622 = vmatpush1.bf16.msra.mxu0 %v449
  %623 = vmatprep.subr.bf16.mxu0 %v452
  %624 = vmatpush1.bf16.msra.mxu0 %v451
  %625 = vmatprep.subr.bf16.mxu0 %v454
  %626 = vmatpush1.bf16.msra.mxu0 %v453
  %627 = vmatprep.subr.bf16.mxu0 %v456
  %628 = vmatpush1.bf16.msra.mxu0 %v455
  %629 = vmatprep.subr.bf16.mxu0 0
  %630 = vmatpush1.bf16.msra.mxu0 0
  %631 = vmatprep.subr.bf16.mxu0 0
  %632 = vmatpush1.bf16.msra.mxu0 0
  %633 = vmatprep.subr.bf16.mxu0 0
  %634 = vmatpush1.bf16.msra.mxu0 0
  %635 = vmatprep.subr.bf16.mxu0 0
  %636 = vmatpush1.bf16.msra.mxu0 0
  %637 = vmatprep.subr.bf16.mxu0 0
  %638 = vmatpush1.bf16.msra.mxu0 0
  %639 = vmatprep.subr.bf16.mxu0 0
  %640 = vmatpush1.bf16.msra.mxu0 0
  %641 = vmatprep.subr.bf16.mxu0 0
  %642 = vmatpush1.bf16.msra.mxu0 0
  %643 = vmatprep.subr.bf16.mxu0 0
  %644 = vmatpush1.bf16.msra.mxu0 0
  %645 = vmatprep.subr.bf16.mxu0 0
  %646 = vmatpush1.bf16.msra.mxu0 0
  %647 = vmatprep.subr.bf16.mxu0 0
  %648 = vmatpush1.bf16.msra.mxu0 0
  %649 = vmatprep.subr.bf16.mxu0 0
  %650 = vmatpush1.bf16.msra.mxu0 0
  %651 = vmatprep.subr.bf16.mxu0 0
  %652 = vmatpush1.bf16.msra.mxu0 0
  %653 = vmatprep.mubr.bf16.mxu0 0
  %654 = vmatmul.mubr.bf16.gmra.mrb[0].mxu0 %v619
  %v655 = vpop.f32.mrb[0].mxu0
  %v656 = vadd.f32 0.0, %v655
  %v657 = vpop.f32.mrb[0].mxu0
  %v658 = vadd.f32 0.0, %v657
  %v659 = vpop.f32.mrb[0].mxu0
  %v660 = vpop.f32.mrb[0].mxu0
  %661 = vdwg.mxu0
  %v662 = vadd.f32 %v612, %v656
  %v663 = vadd.f32 %v613, %v658
  %v664 = vxor.u32 %v662, 2147483648
  %v665 = vxor.u32 %v663, 2147483648
  %v666 = vmul.f32 %v664, 1.442695
  %v667 = vpow.pop %v666
  %v668 = vmul.f32 %v665, 1.442695
  %v669 = vpow.pop %v668
  %v670 = vadd.f32 %v667, 1.0
  %v671 = vadd.f32 %v669, 1.0
  %v672 = vrcp.pop %v670
  %v673 = vmul.f32 1.0, %v672
  %v674 = vrcp.pop %v671
  %v675 = vmul.f32 1.0, %v674
  %v676 = vmul.f32 %v675, 2.0
  %v677 = vsub.f32 %v676, 1.0
  %v678 = vmul.f32 %v673, %v608
  %v679 = vmul.f32 %v673, %v677
  %681 = vrot.lane.b32.xlu0 %v679, 64
  %v682 = vpop.permute.xlu0 %681
  %v684 = vadd.f32 %v678, %v682
  %v685 = vtanh.pop %v684
  %v686 = vmul.f32 %v675, %v685
  %s687 = scalar_lea.vmem [#allocation2], 48
  %v688 = vld [vmem:[%s687] sm:$0xff]
  %v689 = vld [vmem:[%s687 + $0x8] sm:$0xff]
  %v690 = vpack.c.bf16 %v686, %v686
  %692 = vrot.lane.b32.xlu0 %v690, 64
  %v693 = vpop.permute.xlu0 %692
  %v695 = vsel %vm465, %v693, 0
  %697 = vmatprep.subr.bf16.mxu0 %v450
  %698 = vmatpush1.bf16.msra.mxu0 %v449
  %699 = vmatprep.subr.bf16.mxu0 %v452
  %700 = vmatpush1.bf16.msra.mxu0 %v451
  %701 = vmatprep.subr.bf16.mxu0 %v454
  %702 = vmatpush1.bf16.msra.mxu0 %v453
  %703 = vmatprep.subr.bf16.mxu0 %v456
  %704 = vmatpush1.bf16.msra.mxu0 %v455
  %705 = vmatprep.subr.bf16.mxu0 0
  %706 = vmatpush1.bf16.msra.mxu0 0
  %707 = vmatprep.subr.bf16.mxu0 0
  %708 = vmatpush1.bf16.msra.mxu0 0
  %709 = vmatprep.subr.bf16.mxu0 0
  %710 = vmatpush1.bf16.msra.mxu0 0
  %711 = vmatprep.subr.bf16.mxu0 0
  %712 = vmatpush1.bf16.msra.mxu0 0
  %713 = vmatprep.subr.bf16.mxu0 0
  %714 = vmatpush1.bf16.msra.mxu0 0
  %715 = vmatprep.subr.bf16.mxu0 0
  %716 = vmatpush1.bf16.msra.mxu0 0
  %717 = vmatprep.subr.bf16.mxu0 0
  %718 = vmatpush1.bf16.msra.mxu0 0
  %719 = vmatprep.subr.bf16.mxu0 0
  %720 = vmatpush1.bf16.msra.mxu0 0
  %721 = vmatprep.subr.bf16.mxu0 0
  %722 = vmatpush1.bf16.msra.mxu0 0
  %723 = vmatprep.subr.bf16.mxu0 0
  %724 = vmatpush1.bf16.msra.mxu0 0
  %725 = vmatprep.subr.bf16.mxu0 0
  %726 = vmatpush1.bf16.msra.mxu0 0
  %727 = vmatprep.subr.bf16.mxu0 0
  %728 = vmatpush1.bf16.msra.mxu0 0
  %729 = vmatprep.mubr.bf16.mxu0 0
  %730 = vmatmul.mubr.bf16.gmra.mrb[0].mxu0 %v695
  %v731 = vpop.f32.mrb[0].mxu0
  %v732 = vadd.f32 0.0, %v731
  %v733 = vpop.f32.mrb[0].mxu0
  %v734 = vadd.f32 0.0, %v733
  %v735 = vpop.f32.mrb[0].mxu0
  %v736 = vpop.f32.mrb[0].mxu0
  %737 = vdwg.mxu0
  %v738 = vadd.f32 %v688, %v732
  %v739 = vadd.f32 %v689, %v734
  %v740 = vxor.u32 %v738, 2147483648
  %v741 = vxor.u32 %v739, 2147483648
  %v742 = vmul.f32 %v740, 1.442695
  %v743 = vpow.pop %v742
  %v744 = vmul.f32 %v741, 1.442695
  %v745 = vpow.pop %v744
  %v746 = vadd.f32 %v743, 1.0
  %v747 = vadd.f32 %v745, 1.0
  %v748 = vrcp.pop %v746
  %v749 = vmul.f32 1.0, %v748
  %v750 = vrcp.pop %v747
  %v751 = vmul.f32 1.0, %v750
  %v752 = vmul.f32 %v751, 2.0
  %v753 = vsub.f32 %v752, 1.0
  %v754 = vmul.f32 %v749, %v684
  %v755 = vmul.f32 %v749, %v753
  %757 = vrot.lane.b32.xlu0 %v755, 64
  %v758 = vpop.permute.xlu0 %757
  %v760 = vadd.f32 %v754, %v758
  %v761 = vtanh.pop %v760
  %v762 = vmul.f32 %v751, %v761
  %s763 = scalar_lea.vmem [#allocation2], 64
  %v764 = vld [vmem:[%s763] sm:$0xff]
  %v765 = vld [vmem:[%s763 + $0x8] sm:$0xff]
  %v766 = vpack.c.bf16 %v762, %v762
  %768 = vrot.lane.b32.xlu0 %v766, 64
  %v769 = vpop.permute.xlu0 %768
  %v771 = vsel %vm465, %v769, 0
  %773 = vmatprep.subr.bf16.mxu0 %v450
  %774 = vmatpush1.bf16.msra.mxu0 %v449
  %775 = vmatprep.subr.bf16.mxu0 %v452
  %776 = vmatpush1.bf16.msra.mxu0 %v451
  %777 = vmatprep.subr.bf16.mxu0 %v454
  %778 = vmatpush1.bf16.msra.mxu0 %v453
  %779 = vmatprep.subr.bf16.mxu0 %v456
  %780 = vmatpush1.bf16.msra.mxu0 %v455
  %781 = vmatprep.subr.bf16.mxu0 0
  %782 = vmatpush1.bf16.msra.mxu0 0
  %783 = vmatprep.subr.bf16.mxu0 0
  %784 = vmatpush1.bf16.msra.mxu0 0
  %785 = vmatprep.subr.bf16.mxu0 0
  %786 = vmatpush1.bf16.msra.mxu0 0
  %787 = vmatprep.subr.bf16.mxu0 0
  %788 = vmatpush1.bf16.msra.mxu0 0
  %789 = vmatprep.subr.bf16.mxu0 0
  %790 = vmatpush1.bf16.msra.mxu0 0
  %791 = vmatprep.subr.bf16.mxu0 0
  %792 = vmatpush1.bf16.msra.mxu0 0
  %793 = vmatprep.subr.bf16.mxu0 0
  %794 = vmatpush1.bf16.msra.mxu0 0
  %795 = vmatprep.subr.bf16.mxu0 0
  %796 = vmatpush1.bf16.msra.mxu0 0
  %797 = vmatprep.subr.bf16.mxu0 0
  %798 = vmatpush1.bf16.msra.mxu0 0
  %799 = vmatprep.subr.bf16.mxu0 0
  %800 = vmatpush1.bf16.msra.mxu0 0
  %801 = vmatprep.subr.bf16.mxu0 0
  %802 = vmatpush1.bf16.msra.mxu0 0
  %803 = vmatprep.subr.bf16.mxu0 0
  %804 = vmatpush1.bf16.msra.mxu0 0
  %805 = vmatprep.mubr.bf16.mxu0 0
  %806 = vmatmul.mubr.bf16.gmra.mrb[0].mxu0 %v771
  %v807 = vpop.f32.mrb[0].mxu0
  %v808 = vadd.f32 0.0, %v807
  %v809 = vpop.f32.mrb[0].mxu0
  %v810 = vadd.f32 0.0, %v809
  %v811 = vpop.f32.mrb[0].mxu0
  %v812 = vpop.f32.mrb[0].mxu0
  %813 = vdwg.mxu0
  %v814 = vadd.f32 %v764, %v808
  %v815 = vadd.f32 %v765, %v810
  %v816 = vxor.u32 %v814, 2147483648
  %v817 = vxor.u32 %v815, 2147483648
  %v818 = vmul.f32 %v816, 1.442695
  %v819 = vpow.pop %v818
  %v820 = vmul.f32 %v817, 1.442695
  %v821 = vpow.pop %v820
  %v822 = vadd.f32 %v819, 1.0
  %v823 = vadd.f32 %v821, 1.0
  %v824 = vrcp.pop %v822
  %v825 = vmul.f32 1.0, %v824
  %v826 = vrcp.pop %v823
  %v827 = vmul.f32 1.0, %v826
  %v828 = vmul.f32 %v827, 2.0
  %v829 = vsub.f32 %v828, 1.0
  %v830 = vmul.f32 %v825, %v760
  %v831 = vmul.f32 %v825, %v829
  %833 = vrot.lane.b32.xlu0 %v831, 64
  %v834 = vpop.permute.xlu0 %833
  %v836 = vadd.f32 %v830, %v834
  %v837 = vtanh.pop %v836
  %v838 = vmul.f32 %v827, %v837
  %s839 = scalar_lea.vmem [#allocation2], 80
  %v840 = vld [vmem:[%s839] sm:$0xff]
  %v841 = vld [vmem:[%s839 + $0x8] sm:$0xff]
  %v842 = vpack.c.bf16 %v838, %v838
  %844 = vrot.lane.b32.xlu0 %v842, 64
  %v845 = vpop.permute.xlu0 %844
  %v847 = vsel %vm465, %v845, 0
  %849 = vmatprep.subr.bf16.mxu0 %v450
  %850 = vmatpush1.bf16.msra.mxu0 %v449
  %851 = vmatprep.subr.bf16.mxu0 %v452
  %852 = vmatpush1.bf16.msra.mxu0 %v451
  %853 = vmatprep.subr.bf16.mxu0 %v454
  %854 = vmatpush1.bf16.msra.mxu0 %v453
  %855 = vmatprep.subr.bf16.mxu0 %v456
  %856 = vmatpush1.bf16.msra.mxu0 %v455
  %857 = vmatprep.subr.bf16.mxu0 0
  %858 = vmatpush1.bf16.msra.mxu0 0
  %859 = vmatprep.subr.bf16.mxu0 0
  %860 = vmatpush1.bf16.msra.mxu0 0
  %861 = vmatprep.subr.bf16.mxu0 0
  %862 = vmatpush1.bf16.msra.mxu0 0
  %863 = vmatprep.subr.bf16.mxu0 0
  %864 = vmatpush1.bf16.msra.mxu0 0
  %865 = vmatprep.subr.bf16.mxu0 0
  %866 = vmatpush1.bf16.msra.mxu0 0
  %867 = vmatprep.subr.bf16.mxu0 0
  %868 = vmatpush1.bf16.msra.mxu0 0
  %869 = vmatprep.subr.bf16.mxu0 0
  %870 = vmatpush1.bf16.msra.mxu0 0
  %871 = vmatprep.subr.bf16.mxu0 0
  %872 = vmatpush1.bf16.msra.mxu0 0
  %873 = vmatprep.subr.bf16.mxu0 0
  %874 = vmatpush1.bf16.msra.mxu0 0
  %875 = vmatprep.subr.bf16.mxu0 0
  %876 = vmatpush1.bf16.msra.mxu0 0
  %877 = vmatprep.subr.bf16.mxu0 0
  %878 = vmatpush1.bf16.msra.mxu0 0
  %879 = vmatprep.subr.bf16.mxu0 0
  %880 = vmatpush1.bf16.msra.mxu0 0
  %881 = vmatprep.mubr.bf16.mxu0 0
  %882 = vmatmul.mubr.bf16.gmra.mrb[0].mxu0 %v847
  %v883 = vpop.f32.mrb[0].mxu0
  %v884 = vadd.f32 0.0, %v883
  %v885 = vpop.f32.mrb[0].mxu0
  %v886 = vadd.f32 0.0, %v885
  %v887 = vpop.f32.mrb[0].mxu0
  %v888 = vpop.f32.mrb[0].mxu0
  %889 = vdwg.mxu0
  %v890 = vadd.f32 %v840, %v884
  %v891 = vadd.f32 %v841, %v886
  %v892 = vxor.u32 %v890, 2147483648
  %v893 = vxor.u32 %v891, 2147483648
  %v894 = vmul.f32 %v892, 1.442695
  %v895 = vpow.pop %v894
  %v896 = vmul.f32 %v893, 1.442695
  %v897 = vpow.pop %v896
  %v898 = vadd.f32 %v895, 1.0
  %v899 = vadd.f32 %v897, 1.0
  %v900 = vrcp.pop %v898
  %v901 = vmul.f32 1.0, %v900
  %v902 = vrcp.pop %v899
  %v903 = vmul.f32 1.0, %v902
  %v904 = vmul.f32 %v903, 2.0
  %v905 = vsub.f32 %v904, 1.0
  %v906 = vmul.f32 %v901, %v836
  %v907 = vmul.f32 %v901, %v905
  %909 = vrot.lane.b32.xlu0 %v907, 64
  %v910 = vpop.permute.xlu0 %909
  %v912 = vadd.f32 %v906, %v910
  %v913 = vtanh.pop %v912
  %v914 = vmul.f32 %v903, %v913
  %s915 = scalar_lea.vmem [#allocation2], 96
  %v916 = vld [vmem:[%s915] sm:$0xff]
  %v917 = vld [vmem:[%s915 + $0x8] sm:$0xff]
  %v918 = vpack.c.bf16 %v914, %v914
  %920 = vrot.lane.b32.xlu0 %v918, 64
  %v921 = vpop.permute.xlu0 %920
  %v923 = vsel %vm465, %v921, 0
  %925 = vmatprep.subr.bf16.mxu0 %v450
  %926 = vmatpush1.bf16.msra.mxu0 %v449
  %927 = vmatprep.subr.bf16.mxu0 %v452
  %928 = vmatpush1.bf16.msra.mxu0 %v451
  %929 = vmatprep.subr.bf16.mxu0 %v454
  %930 = vmatpush1.bf16.msra.mxu0 %v453
  %931 = vmatprep.subr.bf16.mxu0 %v456
  %932 = vmatpush1.bf16.msra.mxu0 %v455
  %933 = vmatprep.subr.bf16.mxu0 0
  %934 = vmatpush1.bf16.msra.mxu0 0
  %935 = vmatprep.subr.bf16.mxu0 0
  %936 = vmatpush1.bf16.msra.mxu0 0
  %937 = vmatprep.subr.bf16.mxu0 0
  %938 = vmatpush1.bf16.msra.mxu0 0
  %939 = vmatprep.subr.bf16.mxu0 0
  %940 = vmatpush1.bf16.msra.mxu0 0
  %941 = vmatprep.subr.bf16.mxu0 0
  %942 = vmatpush1.bf16.msra.mxu0 0
  %943 = vmatprep.subr.bf16.mxu0 0
  %944 = vmatpush1.bf16.msra.mxu0 0
  %945 = vmatprep.subr.bf16.mxu0 0
  %946 = vmatpush1.bf16.msra.mxu0 0
  %947 = vmatprep.subr.bf16.mxu0 0
  %948 = vmatpush1.bf16.msra.mxu0 0
  %949 = vmatprep.subr.bf16.mxu0 0
  %950 = vmatpush1.bf16.msra.mxu0 0
  %951 = vmatprep.subr.bf16.mxu0 0
  %952 = vmatpush1.bf16.msra.mxu0 0
  %953 = vmatprep.subr.bf16.mxu0 0
  %954 = vmatpush1.bf16.msra.mxu0 0
  %955 = vmatprep.subr.bf16.mxu0 0
  %956 = vmatpush1.bf16.msra.mxu0 0
  %957 = vmatprep.mubr.bf16.mxu0 0
  %958 = vmatmul.mubr.bf16.gmra.mrb[0].mxu0 %v923
  %v959 = vpop.f32.mrb[0].mxu0
  %v960 = vadd.f32 0.0, %v959
  %v961 = vpop.f32.mrb[0].mxu0
  %v962 = vadd.f32 0.0, %v961
  %v963 = vpop.f32.mrb[0].mxu0
  %v964 = vpop.f32.mrb[0].mxu0
  %965 = vdwg.mxu0
  %v966 = vadd.f32 %v916, %v960
  %v967 = vadd.f32 %v917, %v962
  %v968 = vxor.u32 %v966, 2147483648
  %v969 = vxor.u32 %v967, 2147483648
  %v970 = vmul.f32 %v968, 1.442695
  %v971 = vpow.pop %v970
  %v972 = vmul.f32 %v969, 1.442695
  %v973 = vpow.pop %v972
  %v974 = vadd.f32 %v971, 1.0
  %v975 = vadd.f32 %v973, 1.0
  %v976 = vrcp.pop %v974
  %v977 = vmul.f32 1.0, %v976
  %v978 = vrcp.pop %v975
  %v979 = vmul.f32 1.0, %v978
  %v980 = vmul.f32 %v979, 2.0
  %v981 = vsub.f32 %v980, 1.0
  %v982 = vmul.f32 %v977, %v912
  %v983 = vmul.f32 %v977, %v981
  %985 = vrot.lane.b32.xlu0 %v983, 64
  %v986 = vpop.permute.xlu0 %985
  %v988 = vadd.f32 %v982, %v986
  %v989 = vtanh.pop %v988
  %v990 = vmul.f32 %v979, %v989
  %s991 = scalar_lea.vmem [#allocation2], 112
  %v992 = vld [vmem:[%s991] sm:$0xff]
  %v993 = vld [vmem:[%s991 + $0x8] sm:$0xff]
  %v994 = vpack.c.bf16 %v990, %v990
  %996 = vrot.lane.b32.xlu0 %v994, 64
  %v997 = vpop.permute.xlu0 %996
  %v999 = vsel %vm465, %v997, 0
  %1001 = vmatprep.subr.bf16.mxu0 %v450
  %1002 = vmatpush1.bf16.msra.mxu0 %v449
  %1003 = vmatprep.subr.bf16.mxu0 %v452
  %1004 = vmatpush1.bf16.msra.mxu0 %v451
  %1005 = vmatprep.subr.bf16.mxu0 %v454
  %1006 = vmatpush1.bf16.msra.mxu0 %v453
  %1007 = vmatprep.subr.bf16.mxu0 %v456
  %1008 = vmatpush1.bf16.msra.mxu0 %v455
  %1009 = vmatprep.subr.bf16.mxu0 0
  %1010 = vmatpush1.bf16.msra.mxu0 0
  %1011 = vmatprep.subr.bf16.mxu0 0
  %1012 = vmatpush1.bf16.msra.mxu0 0
  %1013 = vmatprep.subr.bf16.mxu0 0
  %1014 = vmatpush1.bf16.msra.mxu0 0
  %1015 = vmatprep.subr.bf16.mxu0 0
  %1016 = vmatpush1.bf16.msra.mxu0 0
  %1017 = vmatprep.subr.bf16.mxu0 0
  %1018 = vmatpush1.bf16.msra.mxu0 0
  %1019 = vmatprep.subr.bf16.mxu0 0
  %1020 = vmatpush1.bf16.msra.mxu0 0
  %1021 = vmatprep.subr.bf16.mxu0 0
  %1022 = vmatpush1.bf16.msra.mxu0 0
  %1023 = vmatprep.subr.bf16.mxu0 0
  %1024 = vmatpush1.bf16.msra.mxu0 0
  %1025 = vmatprep.subr.bf16.mxu0 0
  %1026 = vmatpush1.bf16.msra.mxu0 0
  %1027 = vmatprep.subr.bf16.mxu0 0
  %1028 = vmatpush1.bf16.msra.mxu0 0
  %1029 = vmatprep.subr.bf16.mxu0 0
  %1030 = vmatpush1.bf16.msra.mxu0 0
  %1031 = vmatprep.subr.bf16.mxu0 0
  %1032 = vmatpush1.bf16.msra.mxu0 0
  %1033 = vmatprep.mubr.bf16.mxu0 0
  %1034 = vmatmul.mubr.bf16.gmra.mrb[0].mxu0 %v999
  %v1035 = vpop.f32.mrb[0].mxu0
  %v1036 = vadd.f32 0.0, %v1035
  %v1037 = vpop.f32.mrb[0].mxu0
  %v1038 = vadd.f32 0.0, %v1037
  %v1039 = vpop.f32.mrb[0].mxu0
  %v1040 = vpop.f32.mrb[0].mxu0
  %1041 = vdwg.mxu0
  %v1042 = vadd.f32 %v992, %v1036
  %v1043 = vadd.f32 %v993, %v1038
  %v1044 = vxor.u32 %v1042, 2147483648
  %v1045 = vxor.u32 %v1043, 2147483648
  %v1046 = vmul.f32 %v1044, 1.442695
  %v1047 = vpow.pop %v1046
  %v1048 = vmul.f32 %v1045, 1.442695
  %v1049 = vpow.pop %v1048
  %v1050 = vadd.f32 %v1047, 1.0
  %v1051 = vadd.f32 %v1049, 1.0
  %v1052 = vrcp.pop %v1050
  %v1053 = vmul.f32 1.0, %v1052
  %v1054 = vrcp.pop %v1051
  %v1055 = vmul.f32 1.0, %v1054
  %v1056 = vmul.f32 %v1055, 2.0
  %v1057 = vsub.f32 %v1056, 1.0
  %v1058 = vmul.f32 %v1053, %v988
  %v1059 = vmul.f32 %v1053, %v1057
  %1061 = vrot.lane.b32.xlu0 %v1059, 64
  %v1062 = vpop.permute.xlu0 %1061
  %v1064 = vadd.f32 %v1058, %v1062
  %v1065 = vtanh.pop %v1064
  %v1066 = vmul.f32 %v1055, %v1065
  %v1067 = vld [vmem:[%s7] sm:$0xf]
  %v1068 = vld [vmem:[%s7 + $0x4] sm:$0xf]
  %v1069 = vld [vmem:[%s7 + $0x8] sm:$0xf]
  %v1070 = vld [vmem:[%s7 + $0xc] sm:$0xf]
  %v1071 = vld [vmem:[%s7 + $0x10] sm:$0xf]
  %v1072 = vld [vmem:[%s7 + $0x14] sm:$0xf]
  %v1073 = vld [vmem:[%s7 + $0x18] sm:$0xf]
  %v1074 = vld [vmem:[%s7 + $0x1c] sm:$0xf]
  %v1075 = vld [vmem:[%s7 + $0x20] sm:$0xf]
  %v1076 = vld [vmem:[%s7 + $0x24] sm:$0xf]
  %v1077 = vld [vmem:[%s7 + $0x28] sm:$0xf]
  %v1078 = vld [vmem:[%s7 + $0x2c] sm:$0xf]
  %v1079 = vld [vmem:[%s7 + $0x30] sm:$0xf]
  %v1080 = vld [vmem:[%s7 + $0x34] sm:$0xf]
  %v1081 = vld [vmem:[%s7 + $0x38] sm:$0xf]
  %v1082 = vld [vmem:[%s7 + $0x3c] sm:$0xf]
  %v1083 = vld [vmem:[%s7 + $0x40] sm:$0xf]
  %v1084 = vld [vmem:[%s7 + $0x44] sm:$0xf]
  %v1085 = vld [vmem:[%s7 + $0x48] sm:$0xf]
  %v1086 = vld [vmem:[%s7 + $0x4c] sm:$0xf]
  %v1087 = vpack.c.bf16 %v355, %v355
  %v1088 = vpack.c.bf16 %v1066, %v1066
  %1090 = vrot.lane.b32.xlu0 %v1088, 64
  %v1091 = vpop.permute.xlu0 %1090
  %v1100 = vunpack.c.l.b16 %v1075
  %v1101 = vunpack.c.l.b16 %v1076
  %v1102 = vunpack.c.l.b16 %v1077
  %v1103 = vunpack.c.l.b16 %v1078
  %v1104 = vunpack.c.l.b16 %v1079
  %v1105 = vunpack.c.l.b16 %v1080
  %v1106 = vunpack.c.l.b16 %v1081
  %v1107 = vunpack.c.l.b16 %v1082
  %v1108 = vpack.c.b16 %v1101, %v1100
  %v1109 = vpack.c.b16 %v1103, %v1102
  %v1110 = vpack.c.b16 %v1105, %v1104
  %v1111 = vpack.c.b16 %v1107, %v1106
  %v1117 = vsel %vm465, %v1091, 0
  %1119 = vmatprep.subr.bf16.mxu0 0
  %1120 = vmatpush1.bf16.msra.mxu0 %v1108
  %1121 = vmatprep.subr.bf16.mxu0 0
  %1122 = vmatpush1.bf16.msra.mxu0 %v1109
  %1123 = vmatprep.subr.bf16.mxu0 0
  %1124 = vmatpush1.bf16.msra.mxu0 %v1110
  %1125 = vmatprep.subr.bf16.mxu0 0
  %1126 = vmatpush1.bf16.msra.mxu0 %v1111
  %1127 = vmatprep.subr.bf16.mxu0 0
  %1128 = vmatpush1.bf16.msra.mxu0 0
  %1129 = vmatprep.subr.bf16.mxu0 0
  %1130 = vmatpush1.bf16.msra.mxu0 0
  %1131 = vmatprep.subr.bf16.mxu0 0
  %1132 = vmatpush1.bf16.msra.mxu0 0
  %1133 = vmatprep.subr.bf16.mxu0 0
  %1134 = vmatpush1.bf16.msra.mxu0 0
  %1135 = vmatprep.subr.bf16.mxu0 0
  %1136 = vmatpush1.bf16.msra.mxu0 0
  %1137 = vmatprep.subr.bf16.mxu0 0
  %1138 = vmatpush1.bf16.msra.mxu0 0
  %1139 = vmatprep.subr.bf16.mxu0 0
  %1140 = vmatpush1.bf16.msra.mxu0 0
  %1141 = vmatprep.subr.bf16.mxu0 0
  %1142 = vmatpush1.bf16.msra.mxu0 0
  %1143 = vmatprep.subr.bf16.mxu0 0
  %1144 = vmatpush1.bf16.msra.mxu0 0
  %1145 = vmatprep.subr.bf16.mxu0 0
  %1146 = vmatpush1.bf16.msra.mxu0 0
  %1147 = vmatprep.subr.bf16.mxu0 0
  %1148 = vmatpush1.bf16.msra.mxu0 0
  %1149 = vmatprep.subr.bf16.mxu0 0
  %1150 = vmatpush1.bf16.msra.mxu0 0
  %1151 = vmatprep.mubr.bf16.mxu0 0
  %1152 = vmatmul.mubr.bf16.gmra.mrb[0].mxu0 %v1117
  %v1153 = vpop.f32.mrb[0].mxu0
  %v1154 = vadd.f32 0.0, %v1153
  %v1155 = vpop.f32.mrb[0].mxu0
  %v1156 = vpop.f32.mrb[0].mxu0
  %v1157 = vpop.f32.mrb[0].mxu0
  %1158 = vdwg.mxu0
  %v1167 = vunpack.c.l.b16 %v1067
  %v1168 = vunpack.c.l.b16 %v1068
  %v1169 = vunpack.c.l.b16 %v1069
  %v1170 = vunpack.c.l.b16 %v1070
  %v1171 = vunpack.c.l.b16 %v1071
  %v1172 = vunpack.c.l.b16 %v1072
  %v1173 = vunpack.c.l.b16 %v1073
  %v1174 = vunpack.c.l.b16 %v1074
  %v1175 = vpack.c.b16 %v1168, %v1167
  %v1176 = vpack.c.b16 %v1170, %v1169
  %v1177 = vpack.c.b16 %v1172, %v1171
  %v1178 = vpack.c.b16 %v1174, %v1173
  %v1184 = vsel %vm465, %v1087, 0
  %1186 = vmatprep.subr.bf16.mxu0 0
  %1187 = vmatpush1.bf16.msra.mxu0 %v1175
  %1188 = vmatprep.subr.bf16.mxu0 0
  %1189 = vmatpush1.bf16.msra.mxu0 %v1176
  %1190 = vmatprep.subr.bf16.mxu0 0
  %1191 = vmatpush1.bf16.msra.mxu0 %v1177
  %1192 = vmatprep.subr.bf16.mxu0 0
  %1193 = vmatpush1.bf16.msra.mxu0 %v1178
  %1194 = vmatprep.subr.bf16.mxu0 0
  %1195 = vmatpush1.bf16.msra.mxu0 0
  %1196 = vmatprep.subr.bf16.mxu0 0
  %1197 = vmatpush1.bf16.msra.mxu0 0
  %1198 = vmatprep.subr.bf16.mxu0 0
  %1199 = vmatpush1.bf16.msra.mxu0 0
  %1200 = vmatprep.subr.bf16.mxu0 0
  %1201 = vmatpush1.bf16.msra.mxu0 0
  %1202 = vmatprep.subr.bf16.mxu0 0
  %1203 = vmatpush1.bf16.msra.mxu0 0
  %1204 = vmatprep.subr.bf16.mxu0 0
  %1205 = vmatpush1.bf16.msra.mxu0 0
  %1206 = vmatprep.subr.bf16.mxu0 0
  %1207 = vmatpush1.bf16.msra.mxu0 0
  %1208 = vmatprep.subr.bf16.mxu0 0
  %1209 = vmatpush1.bf16.msra.mxu0 0
  %1210 = vmatprep.subr.bf16.mxu0 0
  %1211 = vmatpush1.bf16.msra.mxu0 0
  %1212 = vmatprep.subr.bf16.mxu0 0
  %1213 = vmatpush1.bf16.msra.mxu0 0
  %1214 = vmatprep.subr.bf16.mxu0 0
  %1215 = vmatpush1.bf16.msra.mxu0 0
  %1216 = vmatprep.subr.bf16.mxu0 0
  %1217 = vmatpush1.bf16.msra.mxu0 0
  %1218 = vmatprep.mubr.bf16.mxu0 0
  %1219 = vmatmul.mubr.bf16.gmra.mrb[0].mxu0 %v1184
  %v1220 = vpop.f32.mrb[0].mxu0
  %v1221 = vadd.f32 %v1154, %v1220
  %v1222 = vpop.f32.mrb[0].mxu0
  %v1223 = vpop.f32.mrb[0].mxu0
  %v1224 = vpop.f32.mrb[0].mxu0
  %1225 = vdwg.mxu0
  %v1226 = vpack.c.bf16 %v414, %v414
  %v1231 = vunpack.c.l.b16 %v1083
  %v1232 = vunpack.c.l.b16 %v1084
  %v1233 = vunpack.c.l.b16 %v1085
  %v1234 = vunpack.c.l.b16 %v1086
  %v1235 = vpack.c.b16 %v1232, %v1231
  %v1236 = vpack.c.b16 %v1234, %v1233
  %v1240 = vsel %vm199, %v1226, 0
  %1242 = vmatprep.subr.bf16.mxu0 0
  %1243 = vmatpush1.bf16.msra.mxu0 %v1235
  %1244 = vmatprep.subr.bf16.mxu0 0
  %1245 = vmatpush1.bf16.msra.mxu0 %v1236
  %1246 = vmatprep.subr.bf16.mxu0 0
  %1247 = vmatpush1.bf16.msra.mxu0 0
  %1248 = vmatprep.subr.bf16.mxu0 0
  %1249 = vmatpush1.bf16.msra.mxu0 0
  %1250 = vmatprep.subr.bf16.mxu0 0
  %1251 = vmatpush1.bf16.msra.mxu0 0
  %1252 = vmatprep.subr.bf16.mxu0 0
  %1253 = vmatpush1.bf16.msra.mxu0 0
  %1254 = vmatprep.subr.bf16.mxu0 0
  %1255 = vmatpush1.bf16.msra.mxu0 0
  %1256 = vmatprep.subr.bf16.mxu0 0
  %1257 = vmatpush1.bf16.msra.mxu0 0
  %1258 = vmatprep.subr.bf16.mxu0 0
  %1259 = vmatpush1.bf16.msra.mxu0 0
  %1260 = vmatprep.subr.bf16.mxu0 0
  %1261 = vmatpush1.bf16.msra.mxu0 0
  %1262 = vmatprep.subr.bf16.mxu0 0
  %1263 = vmatpush1.bf16.msra.mxu0 0
  %1264 = vmatprep.subr.bf16.mxu0 0
  %1265 = vmatpush1.bf16.msra.mxu0 0
  %1266 = vmatprep.subr.bf16.mxu0 0
  %1267 = vmatpush1.bf16.msra.mxu0 0
  %1268 = vmatprep.subr.bf16.mxu0 0
  %1269 = vmatpush1.bf16.msra.mxu0 0
  %1270 = vmatprep.subr.bf16.mxu0 0
  %1271 = vmatpush1.bf16.msra.mxu0 0
  %1272 = vmatprep.subr.bf16.mxu0 0
  %1273 = vmatpush1.bf16.msra.mxu0 0
  %1274 = vmatprep.mubr.bf16.mxu0 0
  %1275 = vmatmul.mubr.bf16.gmra.mrb[0].mxu0 %v1240
  %v1276 = vpop.f32.mrb[0].mxu0
  %v1277 = vadd.f32 0.0, %v1276
  %v1278 = vpop.f32.mrb[0].mxu0
  %v1279 = vpop.f32.mrb[0].mxu0
  %v1280 = vpop.f32.mrb[0].mxu0
  %1281 = vdwg.mxu0
  %v1282 = vadd.f32 %v1221, %v1277
  %v1284 = vlaneseq
  %v1285 = vshrl.u32 %v1284, 7
  %v1286 = vsub.s32 0, %v1285
  %v1287 = vrot.slane %v45, %v1286
  %v1289 = vadd.f32 %v1282, %v1287
  %v1290 = vxor.u32 %v1289, 2147483648
  %v1291 = vmul.f32 %v1290, 1.442695
  %v1292 = vpow.pop %v1291
  %v1293 = vadd.f32 %v1292, 1.0
  %v1294 = vrcp.pop %v1293
  %v1295 = vmul.f32 1.0, %v1294
  %vm1296 = vcmask 7168
  %1297 = vst.msk [vmem:[%s9] sm:$0xff] %vm1296, %v1295
  // Predicated region
  $region38: #{lstm_model_forward.1} parent=0 // pred_check
    _
  $region39: #{lstm_model_forward.1} parent=0 // pred_check_branch
    %1299 = sbr.rel (0) target = $region41
  $region40: #{lstm_model_forward.1} parent=0 // pred_region
    _
  $region41: #{lstm_model_forward.1} parent=0 // pred_fallthru
    _
  // Predicated region
  $region42: #{lstm_model_forward.1} parent=0 // pred_check
    _
  $region43: #{lstm_model_forward.1} parent=0 // pred_check_branch
    %1301 = sbr.rel (0) target = $region45
  $region44: #{lstm_model_forward.1} parent=0 // pred_region
    _
  $region45: #{lstm_model_forward.1} parent=0 // pred_fallthru
    _

</llo_original>
